<compile_context>
chip_gen: v5e
topology: v5e:2x2
jax: 0.10.0
libtpu: 0.0.40
codegen_flags: <defaults>
</compile_context>

<pallas_src>
import jax
import jax.numpy as jnp
from jax.experimental import pallas as pl
from jax.experimental.pallas import tpu as pltpu

NEG_SLOPE = 0.2     # LeakyReLU slope used everywhere in the module
BN_EPS = 1e-5


def _leaky(v):
    return jnp.where(v > 0, v, NEG_SLOPE * v)


def _round_up(x, m):
    return ((x + m - 1) // m) * m


# ------------------------------- Pallas kernel -------------------------------
def rdgcn_kernel(xt_ref,                                   # (N, DP)  channels-last
                 wgT_ref, bg_ref,                          # (DP, DP), (1, DP)  conv_global+BN folded
                 wglbT_ref, wxT_ref, bcm_ref,              # (DP, N), (DP, N), (1, N)
                 wdynT_ref, bdyn_ref,                      # (DP, DP), (1, DP)
                 wt0T_ref, wt1T_ref, wt2T_ref, wt3T_ref,   # 4 x (DP, DP)
                 btmp_ref,                                 # (1, DP)
                 wlast_ref, blast_ref,                     # (N, DP), (1, N)
                 out_ref):                                 # (1, N)
    """One grid step = one batch element, everything lane-dense on D."""
    xt = xt_ref[...]                                       # (N, DP)
    n_nodes = xt.shape[0]

    # ---- forward_construct_dynamic_graph ----
    # AdaptiveAvgPool1d(1) over nodes -> (1, DP); conv_global + BN folded affine.
    xg = jnp.mean(xt, axis=0, keepdims=True)               # (1, DP)
    xg = jnp.dot(xg, wgT_ref[...],
                 preferred_element_type=jnp.float32) + bg_ref[...]
    xg = _leaky(xg)                                        # (1, DP)

    # adj^T directly (no (2D, N) concat): adjT[i, j] = adj[j, i]
    adjT = jax.nn.sigmoid(
        jnp.dot(xt, wxT_ref[...], preferred_element_type=jnp.float32)
        + jnp.dot(xg, wglbT_ref[...], preferred_element_type=jnp.float32)
        + bcm_ref[...])                                    # (N, N)

    # ---- forward_dynamic_gcn (shared dynamic_weight + adj, applied 3 times) ----
    wdynT = wdynT_ref[...]
    bdyn = bdyn_ref[...]

    def gcn(vt):                                           # vt: (N, DP)
        y = _leaky(jnp.dot(adjT, vt, preferred_element_type=jnp.float32))
        return _leaky(jnp.dot(y, wdynT,
                              preferred_element_type=jnp.float32) + bdyn)

    x1 = gcn(xt)            # x  = gcn(x_at)
    x2 = gcn(x1 + xt)       # x  = gcn(x + x_at)
    x3 = gcn(x2 + xt)       # x  = gcn(x + x_at)

    # tmp_linear on the channel-concat [x_at, x1, x2, x3] without materializing
    # the concat: four (N, DP) @ (DP, DP) partial matmuls accumulated.
    acc = jnp.dot(xt, wt0T_ref[...], preferred_element_type=jnp.float32)
    acc = acc + jnp.dot(x1, wt1T_ref[...], preferred_element_type=jnp.float32)
    acc = acc + jnp.dot(x2, wt2T_ref[...], preferred_element_type=jnp.float32)
    acc = acc + jnp.dot(x3, wt3T_ref[...], preferred_element_type=jnp.float32)
    yt = _leaky(acc + btmp_ref[...])                       # (N, DP)

    # last_linear + eye-mask diagonal, fused: out3[i] = (w_last[i,:].y_t[i,:] + b)/N
    out3 = jnp.sum(wlast_ref[...] * yt, axis=-1)           # (N,)
    out_ref[...] = ((out3[None, :] + blast_ref[...]) *
                    (1.0 / n_nodes)).astype(out_ref.dtype)


# --------------------------------- wrapper -----------------------------------
def dynamic_graph_convolution(x_at, params):
    """x_at: (B, D, N) in PyTorch NCL layout; params in PyTorch layout."""
    B, D, N = x_at.shape
    DP = _round_up(D, 128)          # 200 -> 256: aligned, unmasked lane extents
    pad = DP - D

    # channels-last + zero-pad D to DP (zeros stay zero through every stage)
    xt = jnp.transpose(x_at, (0, 2, 1))                    # (B, N, D)
    xt = jnp.pad(xt, ((0, 0), (0, 0), (0, pad)))           # (B, N, DP)

    # Fold conv_global + eval-mode BatchNorm into one affine (transposed).
    scale = params["bn_gamma"][:, 0] * jax.lax.rsqrt(params["bn_var"][:, 0] + BN_EPS)
    wgT = (params["w_global"] * scale[:, None]).T                         # (D, D)
    bg = scale * (params["b_global"][:, 0] - params["bn_mean"][:, 0]) \
        + params["bn_beta"][:, 0]                                         # (D,)

    # Split conv_create_co_mat into the global-branch and x-branch halves.
    wcm = params["w_co_mat"]                                              # (N, 2D)
    wglbT = wcm[:, :D].T                                                  # (D, N)
    wxT = wcm[:, D:].T                                                    # (D, N)
    bcm = params["b_co_mat"][:, 0]                                        # (N,)

    wdynT = params["w_dyn"].T                                             # (D, D)
    bdyn = params["b_dyn"][:, 0]                                          # (D,)

    # Split tmp_linear weight (D, 4D) into four (D, D) blocks ([x, x1, x2, x3]).
    wtmp = params["w_tmp"]
    wt = [wtmp[:, i * D:(i + 1) * D].T for i in range(4)]                 # 4 x (D, D)
    btmp = params["b_tmp"][:, 0]                                          # (D,)

    wlast = params["w_last"]                                              # (N, D)
    blast = params["b_last"][:, 0]                                        # (N,)

    def pad_dd(w):   # (D, D) -> (DP, DP)
        return jnp.pad(w, ((0, pad), (0, pad)))

    def pad_row(v):  # (D,) -> (1, DP)
        return jnp.pad(v, (0, pad))[None, :]

    def pad_dn(w):   # (D, N) -> (DP, N)
        return jnp.pad(w, ((0, pad), (0, 0)))

    def pad_nd(w):   # (N, D) -> (N, DP)
        return jnp.pad(w, ((0, 0), (0, pad)))

    kparams = [
        pad_dd(wgT), pad_row(bg),
        pad_dn(wglbT), pad_dn(wxT), bcm[None, :],
        pad_dd(wdynT), pad_row(bdyn),
        pad_dd(wt[0]), pad_dd(wt[1]), pad_dd(wt[2]), pad_dd(wt[3]), pad_row(btmp),
        pad_nd(wlast), blast[None, :],
    ]

    in_specs = [pl.BlockSpec((None, N, DP), lambda b: (b, 0, 0))]
    # All kernel params are 2-D full-array blocks; constant block index (0, 0)
    # => Pallas skips the weight DMA on every grid step after the first.
    in_specs += [pl.BlockSpec(p.shape, lambda b: (0, 0)) for p in kparams]

    out = pl.pallas_call(
        rdgcn_kernel,
        grid=(B,),
        in_specs=in_specs,
        out_specs=pl.BlockSpec((None, 1, N), lambda b: (b, 0, 0)),
        out_shape=jax.ShapeDtypeStruct((B, 1, N), jnp.float32),
        compiler_params=pltpu.CompilerParams(
            dimension_semantics=("parallel",)),   # v7x: 1 batch element per TC
    )(xt, *kparams)
    return out[:, 0, :]                                    # (B, N)


# ----------------------- parameter init (deterministic) -----------------------
def _xavier_uniform(key, out_f, in_f):
    bound = (6.0 / (in_f + out_f)) ** 0.5
    return jax.random.uniform(key, (out_f, in_f), jnp.float32, -bound, bound)


def init_params(key, D, N):
    k = jax.random.split(key, 5)
    return {
        # conv_global: Conv1d(D, D, 1)
        "w_global": _xavier_uniform(k[0], D, D),
        "b_global": jnp.zeros((D, 1), jnp.float32),
        # bn_global: BatchNorm1d(D) (eval-mode running stats)
        "bn_gamma": jnp.ones((D, 1), jnp.float32),
        "bn_beta": jnp.zeros((D, 1), jnp.float32),
        "bn_mean": jnp.zeros((D, 1), jnp.float32),
        "bn_var": jnp.ones((D, 1), jnp.float32),
        # conv_create_co_mat: Conv1d(2D, N, 1)
        "w_co_mat": _xavier_uniform(k[1], N, 2 * D),
        "b_co_mat": jnp.zeros((N, 1), jnp.float32),
        # dynamic_weight: Conv1d(D, D, 1)
        "w_dyn": _xavier_uniform(k[2], D, D),
        "b_dyn": jnp.zeros((D, 1), jnp.float32),
        # tmp_linear: Conv1d(800, D, 1); the hard-coded 800 == 4 * encoder_dim
        "w_tmp": _xavier_uniform(k[3], D, 4 * D),
        "b_tmp": jnp.zeros((D, 1), jnp.float32),
        # last_linear: Conv1d(D, N, 1)
        "w_last": _xavier_uniform(k[4], N, D),
        "b_last": jnp.zeros((N, 1), jnp.float32),
        # mask_mat: eye(N) -- fused into the kernel as diagonal extraction.
    }


# ----------------------------- pure-JAX reference -----------------------------
def reference(x_at, p):
    def one(x):                                            # x: (D, N)
        xg = jnp.mean(x, axis=1, keepdims=True)
        xg = p["w_global"] @ xg + p["b_global"]
        xg = ((xg - p["bn_mean"]) / jnp.sqrt(p["bn_var"] + BN_EPS)
              * p["bn_gamma"] + p["bn_beta"])
        xg = _leaky(xg)
        xcat = jnp.concatenate([jnp.broadcast_to(xg, x.shape), x], axis=0)
        adj = jax.nn.sigmoid(p["w_co_mat"] @ xcat + p["b_co_mat"])

        def gcn(v):
            y = _leaky(v @ adj)
            return _leaky(p["w_dyn"] @ y + p["b_dyn"])

        x1 = gcn(x)
        x2 = gcn(x1 + x)
        x3 = gcn(x2 + x)
        t = jnp.concatenate([x, x1, x2, x3], axis=0)
        y = _leaky(p["w_tmp"] @ t + p["b_tmp"])
        out2 = p["w_last"] @ y + p["b_last"]
        mask = jnp.eye(out2.shape[0], dtype=out2.dtype)    # mask_mat default (detached)
        return jnp.sum(out2 * mask, axis=-1) / out2.shape[-1]

    return jax.vmap(one)(x_at)


if __name__ == "__main__":
    B = 2           # batch
    D = 200         # encoder_dim (so tmp_linear's hard-coded 800 == 4 * D)
    N = 8           # num_nodes

    key = jax.random.PRNGKey(0)
    k_x, k_p = jax.random.split(key)
    x_at = jax.random.normal(k_x, (B, D, N), dtype=jnp.float32)
    params = init_params(k_p, D, N)

    out = dynamic_graph_convolution(x_at, params)
    out = jax.block_until_ready(out)

    ref = jax.block_until_ready(reference(x_at, params))
    assert out.shape == (B, N)
    assert jnp.allclose(out, ref, rtol=2e-4, atol=2e-4), (out, ref)

    print("KERNEL_OK")
</pallas_src>

<mosaic_0001>
module attributes {stable_mosaic.version = 11 : i64} {
  func.func @rdgcn_kernel(%arg0: i32, %arg1: memref<1x8x256xf32, #tpu.memory_space<vmem>>, %arg2: memref<256x256xf32, #tpu.memory_space<vmem>>, %arg3: memref<1x256xf32, #tpu.memory_space<vmem>>, %arg4: memref<256x8xf32, #tpu.memory_space<vmem>>, %arg5: memref<256x8xf32, #tpu.memory_space<vmem>>, %arg6: memref<1x8xf32, #tpu.memory_space<vmem>>, %arg7: memref<256x256xf32, #tpu.memory_space<vmem>>, %arg8: memref<1x256xf32, #tpu.memory_space<vmem>>, %arg9: memref<256x256xf32, #tpu.memory_space<vmem>>, %arg10: memref<256x256xf32, #tpu.memory_space<vmem>>, %arg11: memref<256x256xf32, #tpu.memory_space<vmem>>, %arg12: memref<256x256xf32, #tpu.memory_space<vmem>>, %arg13: memref<1x256xf32, #tpu.memory_space<vmem>>, %arg14: memref<8x256xf32, #tpu.memory_space<vmem>>, %arg15: memref<1x8xf32, #tpu.memory_space<vmem>>, %arg16: memref<1x1x8xf32, #tpu.memory_space<vmem>>) attributes {dimension_semantics = [#tpu.dimension_semantics<parallel>], iteration_bounds = array<i64: 2>, scalar_prefetch = 0 : i64, scratch_operands = 0 : i64, tpu.core_type = #tpu.core_type<tc>, window_params = [{transform_indices = @transform_0, window_bounds = array<i64: 1, 8, 256>}, {pipeline_mode = #tpu.pipeline_mode<synchronous>, transform_indices = @transform_1, window_bounds = array<i64: 256, 256>}, {pipeline_mode = #tpu.pipeline_mode<synchronous>, transform_indices = @transform_2, window_bounds = array<i64: 1, 256>}, {pipeline_mode = #tpu.pipeline_mode<synchronous>, transform_indices = @transform_3, window_bounds = array<i64: 256, 8>}, {pipeline_mode = #tpu.pipeline_mode<synchronous>, transform_indices = @transform_4, window_bounds = array<i64: 256, 8>}, {pipeline_mode = #tpu.pipeline_mode<synchronous>, transform_indices = @transform_5, window_bounds = array<i64: 1, 8>}, {pipeline_mode = #tpu.pipeline_mode<synchronous>, transform_indices = @transform_6, window_bounds = array<i64: 256, 256>}, {pipeline_mode = #tpu.pipeline_mode<synchronous>, transform_indices = @transform_7, window_bounds = array<i64: 1, 256>}, {pipeline_mode = #tpu.pipeline_mode<synchronous>, transform_indices = @transform_8, window_bounds = array<i64: 256, 256>}, {pipeline_mode = #tpu.pipeline_mode<synchronous>, transform_indices = @transform_9, window_bounds = array<i64: 256, 256>}, {pipeline_mode = #tpu.pipeline_mode<synchronous>, transform_indices = @transform_10, window_bounds = array<i64: 256, 256>}, {pipeline_mode = #tpu.pipeline_mode<synchronous>, transform_indices = @transform_11, window_bounds = array<i64: 256, 256>}, {pipeline_mode = #tpu.pipeline_mode<synchronous>, transform_indices = @transform_12, window_bounds = array<i64: 1, 256>}, {pipeline_mode = #tpu.pipeline_mode<synchronous>, transform_indices = @transform_13, window_bounds = array<i64: 8, 256>}, {pipeline_mode = #tpu.pipeline_mode<synchronous>, transform_indices = @transform_14, window_bounds = array<i64: 1, 8>}, {transform_indices = @transform_15, window_bounds = array<i64: 1, 1, 8>}]} {
    %c0 = arith.constant 0 : index
    %c0_0 = arith.constant 0 : index
    %c0_1 = arith.constant 0 : index
    %0 = vector.load %arg1[%c0, %c0_0, %c0_1] : memref<1x8x256xf32, #tpu.memory_space<vmem>>, vector<1x8x256xf32>
    %1 = vector.shape_cast %0 : vector<1x8x256xf32> to vector<8x256xf32>
    %cst = arith.constant dense<0.000000e+00> : vector<256xf32>
    %2 = vector.multi_reduction <add>, %1, %cst [0] : vector<8x256xf32> to vector<256xf32>
    %3 = vector.shape_cast %2 : vector<256xf32> to vector<1x256xf32>
    %cst_2 = arith.constant 8.000000e+00 : f32
    %4 = vector.broadcast %cst_2 : f32 to vector<1x256xf32>
    %5 = arith.divf %3, %4 : vector<1x256xf32>
    %c0_3 = arith.constant 0 : index
    %c0_4 = arith.constant 0 : index
    %6 = vector.load %arg2[%c0_3, %c0_4] : memref<256x256xf32, #tpu.memory_space<vmem>>, vector<256x256xf32>
    %cst_5 = arith.constant dense<0.000000e+00> : vector<1x256xf32>
    %7 = tpu.matmul %5, %6, %cst_5 {dimension_numbers = #tpu.dot_dimension_numbers<[1], [0], [0], [1], [0, 0, 1, 1], [], []>} : vector<1x256xf32>, vector<256x256xf32>, vector<1x256xf32> -> vector<1x256xf32>
    %c0_6 = arith.constant 0 : index
    %c0_7 = arith.constant 0 : index
    %8 = vector.load %arg3[%c0_6, %c0_7] : memref<1x256xf32, #tpu.memory_space<vmem>>, vector<1x256xf32>
    %9 = arith.addf %7, %8 : vector<1x256xf32>
    %cst_8 = arith.constant 0.000000e+00 : f32
    %10 = vector.broadcast %cst_8 : f32 to vector<1x256xf32>
    %11 = arith.cmpf ogt, %9, %10 : vector<1x256xf32>
    %cst_9 = arith.constant 2.000000e-01 : f32
    %12 = vector.broadcast %cst_9 : f32 to vector<1x256xf32>
    %13 = arith.mulf %12, %9 : vector<1x256xf32>
    %14 = arith.select %11, %9, %13 : vector<1x256xi1>, vector<1x256xf32>
    %c0_10 = arith.constant 0 : index
    %c0_11 = arith.constant 0 : index
    %15 = vector.load %arg5[%c0_10, %c0_11] : memref<256x8xf32, #tpu.memory_space<vmem>>, vector<256x8xf32>
    %cst_12 = arith.constant dense<0.000000e+00> : vector<8x8xf32>
    %16 = tpu.matmul %1, %15, %cst_12 {dimension_numbers = #tpu.dot_dimension_numbers<[1], [0], [0], [1], [0, 0, 1, 1], [], []>} : vector<8x256xf32>, vector<256x8xf32>, vector<8x8xf32> -> vector<8x8xf32>
    %c0_13 = arith.constant 0 : index
    %c0_14 = arith.constant 0 : index
    %17 = vector.load %arg4[%c0_13, %c0_14] : memref<256x8xf32, #tpu.memory_space<vmem>>, vector<256x8xf32>
    %cst_15 = arith.constant dense<0.000000e+00> : vector<1x8xf32>
    %18 = tpu.matmul %14, %17, %cst_15 {dimension_numbers = #tpu.dot_dimension_numbers<[1], [0], [0], [1], [0, 0, 1, 1], [], []>} : vector<1x256xf32>, vector<256x8xf32>, vector<1x8xf32> -> vector<1x8xf32>
    %19 = vector.broadcast %18 : vector<1x8xf32> to vector<8x8xf32>
    %20 = arith.addf %16, %19 : vector<8x8xf32>
    %c0_16 = arith.constant 0 : index
    %c0_17 = arith.constant 0 : index
    %21 = vector.load %arg6[%c0_16, %c0_17] : memref<1x8xf32, #tpu.memory_space<vmem>>, vector<1x8xf32>
    %22 = vector.broadcast %21 : vector<1x8xf32> to vector<8x8xf32>
    %23 = arith.addf %20, %22 : vector<8x8xf32>
    %24 = arith.negf %23 : vector<8x8xf32>
    %25 = math.exp %24 : vector<8x8xf32>
    %cst_18 = arith.constant 1.000000e+00 : f32
    %26 = vector.broadcast %cst_18 : f32 to vector<8x8xf32>
    %27 = arith.addf %26, %25 : vector<8x8xf32>
    %28 = arith.divf %26, %27 : vector<8x8xf32>
    %c0_19 = arith.constant 0 : index
    %c0_20 = arith.constant 0 : index
    %29 = vector.load %arg7[%c0_19, %c0_20] : memref<256x256xf32, #tpu.memory_space<vmem>>, vector<256x256xf32>
    %c0_21 = arith.constant 0 : index
    %c0_22 = arith.constant 0 : index
    %30 = vector.load %arg8[%c0_21, %c0_22] : memref<1x256xf32, #tpu.memory_space<vmem>>, vector<1x256xf32>
    %cst_23 = arith.constant dense<0.000000e+00> : vector<8x256xf32>
    %31 = tpu.matmul %28, %1, %cst_23 {dimension_numbers = #tpu.dot_dimension_numbers<[1], [0], [0], [1], [0, 0, 1, 1], [], []>} : vector<8x8xf32>, vector<8x256xf32>, vector<8x256xf32> -> vector<8x256xf32>
    %cst_24 = arith.constant 0.000000e+00 : f32
    %32 = vector.broadcast %cst_24 : f32 to vector<8x256xf32>
    %33 = arith.cmpf ogt, %31, %32 : vector<8x256xf32>
    %cst_25 = arith.constant 2.000000e-01 : f32
    %34 = vector.broadcast %cst_25 : f32 to vector<8x256xf32>
    %35 = arith.mulf %34, %31 : vector<8x256xf32>
    %36 = arith.select %33, %31, %35 : vector<8x256xi1>, vector<8x256xf32>
    %cst_26 = arith.constant dense<0.000000e+00> : vector<8x256xf32>
    %37 = tpu.matmul %36, %29, %cst_26 {dimension_numbers = #tpu.dot_dimension_numbers<[1], [0], [0], [1], [0, 0, 1, 1], [], []>} : vector<8x256xf32>, vector<256x256xf32>, vector<8x256xf32> -> vector<8x256xf32>
    %38 = vector.broadcast %30 : vector<1x256xf32> to vector<8x256xf32>
    %39 = arith.addf %37, %38 : vector<8x256xf32>
    %cst_27 = arith.constant 0.000000e+00 : f32
    %40 = vector.broadcast %cst_27 : f32 to vector<8x256xf32>
    %41 = arith.cmpf ogt, %39, %40 : vector<8x256xf32>
    %cst_28 = arith.constant 2.000000e-01 : f32
    %42 = vector.broadcast %cst_28 : f32 to vector<8x256xf32>
    %43 = arith.mulf %42, %39 : vector<8x256xf32>
    %44 = arith.select %41, %39, %43 : vector<8x256xi1>, vector<8x256xf32>
    %45 = arith.addf %44, %1 : vector<8x256xf32>
    %cst_29 = arith.constant dense<0.000000e+00> : vector<8x256xf32>
    %46 = tpu.matmul %28, %45, %cst_29 {dimension_numbers = #tpu.dot_dimension_numbers<[1], [0], [0], [1], [0, 0, 1, 1], [], []>} : vector<8x8xf32>, vector<8x256xf32>, vector<8x256xf32> -> vector<8x256xf32>
    %cst_30 = arith.constant 0.000000e+00 : f32
    %47 = vector.broadcast %cst_30 : f32 to vector<8x256xf32>
    %48 = arith.cmpf ogt, %46, %47 : vector<8x256xf32>
    %cst_31 = arith.constant 2.000000e-01 : f32
    %49 = vector.broadcast %cst_31 : f32 to vector<8x256xf32>
    %50 = arith.mulf %49, %46 : vector<8x256xf32>
    %51 = arith.select %48, %46, %50 : vector<8x256xi1>, vector<8x256xf32>
    %cst_32 = arith.constant dense<0.000000e+00> : vector<8x256xf32>
    %52 = tpu.matmul %51, %29, %cst_32 {dimension_numbers = #tpu.dot_dimension_numbers<[1], [0], [0], [1], [0, 0, 1, 1], [], []>} : vector<8x256xf32>, vector<256x256xf32>, vector<8x256xf32> -> vector<8x256xf32>
    %53 = vector.broadcast %30 : vector<1x256xf32> to vector<8x256xf32>
    %54 = arith.addf %52, %53 : vector<8x256xf32>
    %cst_33 = arith.constant 0.000000e+00 : f32
    %55 = vector.broadcast %cst_33 : f32 to vector<8x256xf32>
    %56 = arith.cmpf ogt, %54, %55 : vector<8x256xf32>
    %cst_34 = arith.constant 2.000000e-01 : f32
    %57 = vector.broadcast %cst_34 : f32 to vector<8x256xf32>
    %58 = arith.mulf %57, %54 : vector<8x256xf32>
    %59 = arith.select %56, %54, %58 : vector<8x256xi1>, vector<8x256xf32>
    %60 = arith.addf %59, %1 : vector<8x256xf32>
    %cst_35 = arith.constant dense<0.000000e+00> : vector<8x256xf32>
    %61 = tpu.matmul %28, %60, %cst_35 {dimension_numbers = #tpu.dot_dimension_numbers<[1], [0], [0], [1], [0, 0, 1, 1], [], []>} : vector<8x8xf32>, vector<8x256xf32>, vector<8x256xf32> -> vector<8x256xf32>
    %cst_36 = arith.constant 0.000000e+00 : f32
    %62 = vector.broadcast %cst_36 : f32 to vector<8x256xf32>
    %63 = arith.cmpf ogt, %61, %62 : vector<8x256xf32>
    %cst_37 = arith.constant 2.000000e-01 : f32
    %64 = vector.broadcast %cst_37 : f32 to vector<8x256xf32>
    %65 = arith.mulf %64, %61 : vector<8x256xf32>
    %66 = arith.select %63, %61, %65 : vector<8x256xi1>, vector<8x256xf32>
    %cst_38 = arith.constant dense<0.000000e+00> : vector<8x256xf32>
    %67 = tpu.matmul %66, %29, %cst_38 {dimension_numbers = #tpu.dot_dimension_numbers<[1], [0], [0], [1], [0, 0, 1, 1], [], []>} : vector<8x256xf32>, vector<256x256xf32>, vector<8x256xf32> -> vector<8x256xf32>
    %68 = vector.broadcast %30 : vector<1x256xf32> to vector<8x256xf32>
    %69 = arith.addf %67, %68 : vector<8x256xf32>
    %cst_39 = arith.constant 0.000000e+00 : f32
    %70 = vector.broadcast %cst_39 : f32 to vector<8x256xf32>
    %71 = arith.cmpf ogt, %69, %70 : vector<8x256xf32>
    %cst_40 = arith.constant 2.000000e-01 : f32
    %72 = vector.broadcast %cst_40 : f32 to vector<8x256xf32>
    %73 = arith.mulf %72, %69 : vector<8x256xf32>
    %74 = arith.select %71, %69, %73 : vector<8x256xi1>, vector<8x256xf32>
    %c0_41 = arith.constant 0 : index
    %c0_42 = arith.constant 0 : index
    %75 = vector.load %arg9[%c0_41, %c0_42] : memref<256x256xf32, #tpu.memory_space<vmem>>, vector<256x256xf32>
    %cst_43 = arith.constant dense<0.000000e+00> : vector<8x256xf32>
    %76 = tpu.matmul %1, %75, %cst_43 {dimension_numbers = #tpu.dot_dimension_numbers<[1], [0], [0], [1], [0, 0, 1, 1], [], []>} : vector<8x256xf32>, vector<256x256xf32>, vector<8x256xf32> -> vector<8x256xf32>
    %c0_44 = arith.constant 0 : index
    %c0_45 = arith.constant 0 : index
    %77 = vector.load %arg10[%c0_44, %c0_45] : memref<256x256xf32, #tpu.memory_space<vmem>>, vector<256x256xf32>
    %cst_46 = arith.constant dense<0.000000e+00> : vector<8x256xf32>
    %78 = tpu.matmul %44, %77, %cst_46 {dimension_numbers = #tpu.dot_dimension_numbers<[1], [0], [0], [1], [0, 0, 1, 1], [], []>} : vector<8x256xf32>, vector<256x256xf32>, vector<8x256xf32> -> vector<8x256xf32>
    %79 = arith.addf %76, %78 : vector<8x256xf32>
    %c0_47 = arith.constant 0 : index
    %c0_48 = arith.constant 0 : index
    %80 = vector.load %arg11[%c0_47, %c0_48] : memref<256x256xf32, #tpu.memory_space<vmem>>, vector<256x256xf32>
    %cst_49 = arith.constant dense<0.000000e+00> : vector<8x256xf32>
    %81 = tpu.matmul %59, %80, %cst_49 {dimension_numbers = #tpu.dot_dimension_numbers<[1], [0], [0], [1], [0, 0, 1, 1], [], []>} : vector<8x256xf32>, vector<256x256xf32>, vector<8x256xf32> -> vector<8x256xf32>
    %82 = arith.addf %79, %81 : vector<8x256xf32>
    %c0_50 = arith.constant 0 : index
    %c0_51 = arith.constant 0 : index
    %83 = vector.load %arg12[%c0_50, %c0_51] : memref<256x256xf32, #tpu.memory_space<vmem>>, vector<256x256xf32>
    %cst_52 = arith.constant dense<0.000000e+00> : vector<8x256xf32>
    %84 = tpu.matmul %74, %83, %cst_52 {dimension_numbers = #tpu.dot_dimension_numbers<[1], [0], [0], [1], [0, 0, 1, 1], [], []>} : vector<8x256xf32>, vector<256x256xf32>, vector<8x256xf32> -> vector<8x256xf32>
    %85 = arith.addf %82, %84 : vector<8x256xf32>
    %c0_53 = arith.constant 0 : index
    %c0_54 = arith.constant 0 : index
    %86 = vector.load %arg13[%c0_53, %c0_54] : memref<1x256xf32, #tpu.memory_space<vmem>>, vector<1x256xf32>
    %87 = vector.broadcast %86 : vector<1x256xf32> to vector<8x256xf32>
    %88 = arith.addf %85, %87 : vector<8x256xf32>
    %cst_55 = arith.constant 0.000000e+00 : f32
    %89 = vector.broadcast %cst_55 : f32 to vector<8x256xf32>
    %90 = arith.cmpf ogt, %88, %89 : vector<8x256xf32>
    %cst_56 = arith.constant 2.000000e-01 : f32
    %91 = vector.broadcast %cst_56 : f32 to vector<8x256xf32>
    %92 = arith.mulf %91, %88 : vector<8x256xf32>
    %93 = arith.select %90, %88, %92 : vector<8x256xi1>, vector<8x256xf32>
    %c0_57 = arith.constant 0 : index
    %c0_58 = arith.constant 0 : index
    %94 = vector.load %arg14[%c0_57, %c0_58] : memref<8x256xf32, #tpu.memory_space<vmem>>, vector<8x256xf32>
    %95 = arith.mulf %94, %93 : vector<8x256xf32>
    %cst_59 = arith.constant dense<0.000000e+00> : vector<8xf32>
    %96 = vector.multi_reduction <add>, %95, %cst_59 [1] : vector<8x256xf32> to vector<8xf32>
    %97 = vector.shape_cast %96 : vector<8xf32> to vector<1x8xf32>
    %c0_60 = arith.constant 0 : index
    %c0_61 = arith.constant 0 : index
    %98 = vector.load %arg15[%c0_60, %c0_61] : memref<1x8xf32, #tpu.memory_space<vmem>>, vector<1x8xf32>
    %99 = arith.addf %97, %98 : vector<1x8xf32>
    %cst_62 = arith.constant 1.250000e-01 : f32
    %100 = vector.broadcast %cst_62 : f32 to vector<1x8xf32>
    %101 = arith.mulf %99, %100 : vector<1x8xf32>
    %c0_63 = arith.constant 0 : index
    %c0_64 = arith.constant 0 : index
    %c0_65 = arith.constant 0 : index
    %102 = vector.load %arg16[%c0_63, %c0_64, %c0_65] : memref<1x1x8xf32, #tpu.memory_space<vmem>>, vector<1x1x8xf32>
    %103 = vector.shape_cast %102 : vector<1x1x8xf32> to vector<1x8xf32>
    %104 = vector.shape_cast %101 : vector<1x8xf32> to vector<1x1x8xf32>
    tpu.vector_store %arg16[%c0_63, %c0_64, %c0_65], %104 {strides = array<i32>} : memref<1x1x8xf32, #tpu.memory_space<vmem>>, vector<1x1x8xf32>,
    return
  }
  func.func @transform_0(%arg0: i32) -> (i32, i32, i32) {
    %c0_i32 = arith.constant 0 : i32
    %c0_i32_0 = arith.constant 0 : i32
    %c0_i32_1 = arith.constant 0 : i32
    return %arg0, %c0_i32, %c0_i32_0 : i32, i32, i32
  }
  func.func @transform_1(%arg0: i32) -> (i32, i32) {
    %c0_i32 = arith.constant 0 : i32
    %c0_i32_0 = arith.constant 0 : i32
    %c0_i32_1 = arith.constant 0 : i32
    return %c0_i32, %c0_i32_0 : i32, i32
  }
  func.func @transform_2(%arg0: i32) -> (i32, i32) {
    %c0_i32 = arith.constant 0 : i32
    %c0_i32_0 = arith.constant 0 : i32
    %c0_i32_1 = arith.constant 0 : i32
    return %c0_i32, %c0_i32_0 : i32, i32
  }
  func.func @transform_3(%arg0: i32) -> (i32, i32) {
    %c0_i32 = arith.constant 0 : i32
    %c0_i32_0 = arith.constant 0 : i32
    %c0_i32_1 = arith.constant 0 : i32
    return %c0_i32, %c0_i32_0 : i32, i32
  }
  func.func @transform_4(%arg0: i32) -> (i32, i32) {
    %c0_i32 = arith.constant 0 : i32
    %c0_i32_0 = arith.constant 0 : i32
    %c0_i32_1 = arith.constant 0 : i32
    return %c0_i32, %c0_i32_0 : i32, i32
  }
  func.func @transform_5(%arg0: i32) -> (i32, i32) {
    %c0_i32 = arith.constant 0 : i32
    %c0_i32_0 = arith.constant 0 : i32
    %c0_i32_1 = arith.constant 0 : i32
    return %c0_i32, %c0_i32_0 : i32, i32
  }
  func.func @transform_6(%arg0: i32) -> (i32, i32) {
    %c0_i32 = arith.constant 0 : i32
    %c0_i32_0 = arith.constant 0 : i32
    %c0_i32_1 = arith.constant 0 : i32
    return %c0_i32, %c0_i32_0 : i32, i32
  }
  func.func @transform_7(%arg0: i32) -> (i32, i32) {
    %c0_i32 = arith.constant 0 : i32
    %c0_i32_0 = arith.constant 0 : i32
    %c0_i32_1 = arith.constant 0 : i32
    return %c0_i32, %c0_i32_0 : i32, i32
  }
  func.func @transform_8(%arg0: i32) -> (i32, i32) {
    %c0_i32 = arith.constant 0 : i32
    %c0_i32_0 = arith.constant 0 : i32
    %c0_i32_1 = arith.constant 0 : i32
    return %c0_i32, %c0_i32_0 : i32, i32
  }
  func.func @transform_9(%arg0: i32) -> (i32, i32) {
    %c0_i32 = arith.constant 0 : i32
    %c0_i32_0 = arith.constant 0 : i32
    %c0_i32_1 = arith.constant 0 : i32
    return %c0_i32, %c0_i32_0 : i32, i32
  }
  func.func @transform_10(%arg0: i32) -> (i32, i32) {
    %c0_i32 = arith.constant 0 : i32
    %c0_i32_0 = arith.constant 0 : i32
    %c0_i32_1 = arith.constant 0 : i32
    return %c0_i32, %c0_i32_0 : i32, i32
  }
  func.func @transform_11(%arg0: i32) -> (i32, i32) {
    %c0_i32 = arith.constant 0 : i32
    %c0_i32_0 = arith.constant 0 : i32
    %c0_i32_1 = arith.constant 0 : i32
    return %c0_i32, %c0_i32_0 : i32, i32
  }
  func.func @transform_12(%arg0: i32) -> (i32, i32) {
    %c0_i32 = arith.constant 0 : i32
    %c0_i32_0 = arith.constant 0 : i32
    %c0_i32_1 = arith.constant 0 : i32
    return %c0_i32, %c0_i32_0 : i32, i32
  }
  func.func @transform_13(%arg0: i32) -> (i32, i32) {
    %c0_i32 = arith.constant 0 : i32
    %c0_i32_0 = arith.constant 0 : i32
    %c0_i32_1 = arith.constant 0 : i32
    return %c0_i32, %c0_i32_0 : i32, i32
  }
  func.func @transform_14(%arg0: i32) -> (i32, i32) {
    %c0_i32 = arith.constant 0 : i32
    %c0_i32_0 = arith.constant 0 : i32
    %c0_i32_1 = arith.constant 0 : i32
    return %c0_i32, %c0_i32_0 : i32, i32
  }
  func.func @transform_15(%arg0: i32) -> (i32, i32, i32) {
    %c0_i32 = arith.constant 0 : i32
    %c0_i32_0 = arith.constant 0 : i32
    %c0_i32_1 = arith.constant 0 : i32
    return %arg0, %c0_i32, %c0_i32_0 : i32, i32, i32
  }
}

</mosaic_0001>

<llo_original>
// kernel: tpu_custom_call.1
$region0: #{tpu_custom_call.1}
  #allocation0 [shape = 'u32[]', space=smem, size = 0x4, offset = 0x4, fixed_abs, tag = 'smem constant byte address 0x4 - core index']
  #allocation1 [shape = 'u32[72,128]{1,0:T(1,128)}', space=vmem, size = 0x9000, scoped, tag = 'internal scratch']
  %s0 = inlined_call_operand.hbm [shape: f32[2,8,256], index: 0, kind: input, shape index: {}]
  %s1 = inlined_call_operand.vmem [shape: f32[256,256], index: 1, kind: input, shape index: {}]
  %s2 = inlined_call_operand.hbm [shape: f32[1,256], index: 2, kind: input, shape index: {}]
  %s3 = inlined_call_operand.vmem [shape: f32[256,8], index: 3, kind: input, shape index: {}]
  %s4 = inlined_call_operand.vmem [shape: f32[256,8], index: 4, kind: input, shape index: {}]
  %s5 = inlined_call_operand.hbm [shape: f32[1,8], index: 5, kind: input, shape index: {}]
  %s6 = inlined_call_operand.hbm [shape: f32[256,256], index: 6, kind: input, shape index: {}]
  %s7 = inlined_call_operand.vmem [shape: f32[1,256], index: 7, kind: input, shape index: {}]
  %s8 = inlined_call_operand.hbm [shape: f32[256,256], index: 8, kind: input, shape index: {}]
  %s9 = inlined_call_operand.hbm [shape: f32[256,256], index: 9, kind: input, shape index: {}]
  %s10 = inlined_call_operand.hbm [shape: f32[256,256], index: 10, kind: input, shape index: {}]
  %s11 = inlined_call_operand.hbm [shape: f32[256,256], index: 11, kind: input, shape index: {}]
  %s12 = inlined_call_operand.vmem [shape: f32[1,256], index: 12, kind: input, shape index: {}]
  %s13 = inlined_call_operand.vmem [shape: f32[8,256], index: 13, kind: input, shape index: {}]
  %s14 = inlined_call_operand.vmem [shape: f32[1,8], index: 14, kind: input, shape index: {}]
  %s15 = inlined_call_operand.hbm [shape: f32[2,1,8], index: 15, kind: output, shape index: {}]
  %s16 = sld [smem:[#allocation0]]
  $region125: #{tpu_custom_call.1} parent=0
    _
  %s18 = ssub.s32 1, %s16
  %s19 = scalar_select 0, %s18, %s16
  $region1: #{tpu_custom_call.1} parent=0
    #allocation2 [shape = 'u8[16384]{0}', space=vmem, size = 0x4000, scoped, tag = 'input window, operand 0']
    #allocation3 [shape = 's32[2]{0}', space=sflag, size = 0x8, scoped, tag = 'scoped memory for tpu_custom_call.1']
    #allocation4 [shape = 's32[2]{0}', space=sflag, size = 0x8, scoped, tag = 'scoped memory for tpu_custom_call.1']
    #allocation5 [shape = 'u8[1024]{0}', space=vmem, size = 0x400, scoped, tag = 'input window, operand 2, single buffered']
    #allocation6 [shape = 's32[1]{0}', space=sflag, size = 0x4, scoped, tag = 'scoped memory for tpu_custom_call.1']
    #allocation7 [shape = 'u8[512]{0}', space=vmem, size = 0x400, scoped, tag = 'input window, operand 5, single buffered']
    #allocation8 [shape = 'u8[262144]{0}', space=vmem, size = 0x40000, scoped, tag = 'input window, operand 6, single buffered']
    #allocation9 [shape = 's32[1]{0}', space=sflag, size = 0x4, scoped, tag = 'scoped memory for tpu_custom_call.1']
    #allocation10 [shape = 'u8[262144]{0}', space=vmem, size = 0x40000, scoped, tag = 'input window, operand 8, single buffered']
    #allocation11 [shape = 'u8[262144]{0}', space=vmem, size = 0x40000, scoped, tag = 'input window, operand 9, single buffered']
    #allocation12 [shape = 's32[1]{0}', space=sflag, size = 0x4, scoped, tag = 'scoped memory for tpu_custom_call.1']
    #allocation13 [shape = 'u8[262144]{0}', space=vmem, size = 0x40000, scoped, tag = 'input window, operand 10, single buffered']
    #allocation14 [shape = 'u8[262144]{0}', space=vmem, size = 0x40000, scoped, tag = 'input window, operand 11, single buffered']
    #allocation15 [shape = 's32[1]{0}', space=sflag, size = 0x4, scoped, tag = 'scoped memory for tpu_custom_call.1']
    #allocation16 [shape = 'u8[1024]{0}', space=vmem, size = 0x400, scoped, tag = 'output window, operand 0']
    %20 = vsyncpa [#allocation3], 0
    %s21 = scalar_lea.sflag [#allocation3], 1
    %22 = vsyncpa %s21, 0
    %23 = vsyncpa [#allocation6], 0
    %24 = vsyncpa [#allocation9], 0
    %25 = vsyncpa [#allocation12], 0
    %26 = vsyncpa [#allocation15], 0
    %27 = vsyncpa [#allocation4], 0
    %s28 = scalar_lea.sflag [#allocation4], 1
    %29 = vsyncpa %s28, 0
    loop: start=0, step=1, limit=4
    $region2: #{tpu_custom_call.1} parent=1 // loop_pre_header
      _
    $region3: #{tpu_custom_call.1} parent=1 // loop_header
      %s31 = sphi 0, %s35
      %p32 = scmp.ge.s32.totalorder %s31, 4
      %s41 = sphi 0, %s43
      %s44 = sphi 0, %s41
      %s45 = sphi 0, %s44
      %s61 = sphi 0, %s45
      %s65 = sphi 0, %s65
      %s67 = sphi 0, %s65
      %s68 = sphi 0, %s67
      %s82 = sphi 0, %s68
      %s86 = sphi 0, %s86
      %s88 = sphi 0, %s86
      %s89 = sphi 0, %s88
      %s103 = sphi 0, %s89
      %s107 = sphi 0, %s107
      %s109 = sphi 0, %s107
      %s110 = sphi 0, %s109
      %s124 = sphi 0, %s110
      %s128 = sphi 0, %s128
      %s130 = sphi 0, %s128
      %s131 = sphi 0, %s130
      %s145 = sphi 0, %s131
      %s149 = sphi 0, %s149
      %s151 = sphi 0, %s149
      %s152 = sphi 0, %s151
      %s166 = sphi 0, %s152
      %s170 = sphi 0, %s170
      %s172 = sphi 0, %s170
      %s173 = sphi 0, %s172
      %s187 = sphi 0, %s173
      %s191 = sphi 0, %s191
      %s193 = sphi 0, %s191
      %s194 = sphi 0, %s193
      %s208 = sphi 0, %s194
      %s212 = sphi 0, %s212
      %s214 = sphi 0, %s212
      %s215 = sphi 0, %s214
      %s229 = sphi 0, %s215
      %s233 = sphi 0, %s233
      %s235 = sphi 0, %s233
      %s236 = sphi 0, %s235
      %s250 = sphi 0, %s236
      %s254 = sphi 0, %s254
      %s256 = sphi 0, %s254
      %s257 = sphi 0, %s256
      %s271 = sphi 0, %s257
      %s275 = sphi 0, %s275
      %s277 = sphi 0, %s275
      %s278 = sphi 0, %s277
      %s292 = sphi 0, %s278
      %s296 = sphi 0, %s296
      %s298 = sphi 0, %s296
      %s299 = sphi 0, %s298
      %s313 = sphi 0, %s299
      %s317 = sphi 0, %s317
      %s319 = sphi 0, %s317
      %s320 = sphi 0, %s319
      %s334 = sphi 0, %s320
      %s338 = sphi 0, %s338
      %s340 = sphi 0, %s338
      %s341 = sphi 0, %s340
      %s355 = sphi 0, %s341
      %s361 = sphi 0, %s363
      %s364 = sphi 0, %s361
      %s365 = sphi 0, %s364
      %s381 = sphi 0, %s365
    $region4: #{tpu_custom_call.1} parent=1 // loop_header_branch
      %34 = sbr.rel (%p32) target = $region8
    $region5: #{tpu_custom_call.1} parent=1 // loop_body
      %s36 = ssub.s32 %s31, 1
      %s37 = ssub.s32 %s31, 2
      %s38 = sadd.s32 %s31, 1
      %s39 = ssub.s32 %s31, %s38
      %p40 = scmp.eq.s32.totalorder %s39, 0
      %s42 = sadd.s32 %s41, 1
      %s43 = scalar_select %p40, %s41, %s42
      %p46 = pneg %p40
      %p47 = scmp.eq.s32.totalorder %s31, 1
      %p48 = por %p46, %p47
      %p49 = scmp.ne.s32.totalorder %s41, %s44
      %p50 = scmp.eq.s32.totalorder %s31, 0
      %p51 = por %p49, %p50
      %p52 = scmp.ne.s32.totalorder %s41, %s44
      %p53 = scmp.eq.s32.totalorder %s36, 1
      %p54 = por %p52, %p53
      %p55 = scmp.ne.s32.totalorder %s44, %s45
      %p56 = scmp.eq.s32.totalorder %s36, 0
      %p57 = por %p55, %p56
      %p58 = scmp.ne.s32.totalorder %s44, %s45
      %p59 = scmp.eq.s32.totalorder %s37, 1
      %p60 = por %p58, %p59
      %p62 = scmp.ne.s32.totalorder %s45, %s61
      %p63 = scmp.eq.s32.totalorder %s37, 0
      %p64 = por %p62, %p63
      %s66 = sadd.s32 %s65, 1
      %p69 = scmp.eq.s32.totalorder %s31, 1
      %p70 = scmp.ne.s32.totalorder %s65, %s67
      %p71 = scmp.eq.s32.totalorder %s31, 0
      %p72 = por %p70, %p71
      %p73 = scmp.ne.s32.totalorder %s65, %s67
      %p74 = scmp.eq.s32.totalorder %s36, 1
      %p75 = por %p73, %p74
      %p76 = scmp.ne.s32.totalorder %s67, %s68
      %p77 = scmp.eq.s32.totalorder %s36, 0
      %p78 = por %p76, %p77
      %p79 = scmp.ne.s32.totalorder %s67, %s68
      %p80 = scmp.eq.s32.totalorder %s37, 1
      %p81 = por %p79, %p80
      %p83 = scmp.ne.s32.totalorder %s68, %s82
      %p84 = scmp.eq.s32.totalorder %s37, 0
      %p85 = por %p83, %p84
      %s87 = sadd.s32 %s86, 1
      %p90 = scmp.eq.s32.totalorder %s31, 1
      %p91 = scmp.ne.s32.totalorder %s86, %s88
      %p92 = scmp.eq.s32.totalorder %s31, 0
      %p93 = por %p91, %p92
      %p94 = scmp.ne.s32.totalorder %s86, %s88
      %p95 = scmp.eq.s32.totalorder %s36, 1
      %p96 = por %p94, %p95
      %p97 = scmp.ne.s32.totalorder %s88, %s89
      %p98 = scmp.eq.s32.totalorder %s36, 0
      %p99 = por %p97, %p98
      %p100 = scmp.ne.s32.totalorder %s88, %s89
      %p101 = scmp.eq.s32.totalorder %s37, 1
      %p102 = por %p100, %p101
      %p104 = scmp.ne.s32.totalorder %s89, %s103
      %p105 = scmp.eq.s32.totalorder %s37, 0
      %p106 = por %p104, %p105
      %s108 = sadd.s32 %s107, 1
      %p111 = scmp.eq.s32.totalorder %s31, 1
      %p112 = scmp.ne.s32.totalorder %s107, %s109
      %p113 = scmp.eq.s32.totalorder %s31, 0
      %p114 = por %p112, %p113
      %p115 = scmp.ne.s32.totalorder %s107, %s109
      %p116 = scmp.eq.s32.totalorder %s36, 1
      %p117 = por %p115, %p116
      %p118 = scmp.ne.s32.totalorder %s109, %s110
      %p119 = scmp.eq.s32.totalorder %s36, 0
      %p120 = por %p118, %p119
      %p121 = scmp.ne.s32.totalorder %s109, %s110
      %p122 = scmp.eq.s32.totalorder %s37, 1
      %p123 = por %p121, %p122
      %p125 = scmp.ne.s32.totalorder %s110, %s124
      %p126 = scmp.eq.s32.totalorder %s37, 0
      %p127 = por %p125, %p126
      %s129 = sadd.s32 %s128, 1
      %p132 = scmp.eq.s32.totalorder %s31, 1
      %p133 = scmp.ne.s32.totalorder %s128, %s130
      %p134 = scmp.eq.s32.totalorder %s31, 0
      %p135 = por %p133, %p134
      %p136 = scmp.ne.s32.totalorder %s128, %s130
      %p137 = scmp.eq.s32.totalorder %s36, 1
      %p138 = por %p136, %p137
      %p139 = scmp.ne.s32.totalorder %s130, %s131
      %p140 = scmp.eq.s32.totalorder %s36, 0
      %p141 = por %p139, %p140
      %p142 = scmp.ne.s32.totalorder %s130, %s131
      %p143 = scmp.eq.s32.totalorder %s37, 1
      %p144 = por %p142, %p143
      %p146 = scmp.ne.s32.totalorder %s131, %s145
      %p147 = scmp.eq.s32.totalorder %s37, 0
      %p148 = por %p146, %p147
      %s150 = sadd.s32 %s149, 1
      %p153 = scmp.eq.s32.totalorder %s31, 1
      %p154 = scmp.ne.s32.totalorder %s149, %s151
      %p155 = scmp.eq.s32.totalorder %s31, 0
      %p156 = por %p154, %p155
      %p157 = scmp.ne.s32.totalorder %s149, %s151
      %p158 = scmp.eq.s32.totalorder %s36, 1
      %p159 = por %p157, %p158
      %p160 = scmp.ne.s32.totalorder %s151, %s152
      %p161 = scmp.eq.s32.totalorder %s36, 0
      %p162 = por %p160, %p161
      %p163 = scmp.ne.s32.totalorder %s151, %s152
      %p164 = scmp.eq.s32.totalorder %s37, 1
      %p165 = por %p163, %p164
      %p167 = scmp.ne.s32.totalorder %s152, %s166
      %p168 = scmp.eq.s32.totalorder %s37, 0
      %p169 = por %p167, %p168
      %s171 = sadd.s32 %s170, 1
      %p174 = scmp.eq.s32.totalorder %s31, 1
      %p175 = scmp.ne.s32.totalorder %s170, %s172
      %p176 = scmp.eq.s32.totalorder %s31, 0
      %p177 = por %p175, %p176
      %p178 = scmp.ne.s32.totalorder %s170, %s172
      %p179 = scmp.eq.s32.totalorder %s36, 1
      %p180 = por %p178, %p179
      %p181 = scmp.ne.s32.totalorder %s172, %s173
      %p182 = scmp.eq.s32.totalorder %s36, 0
      %p183 = por %p181, %p182
      %p184 = scmp.ne.s32.totalorder %s172, %s173
      %p185 = scmp.eq.s32.totalorder %s37, 1
      %p186 = por %p184, %p185
      %p188 = scmp.ne.s32.totalorder %s173, %s187
      %p189 = scmp.eq.s32.totalorder %s37, 0
      %p190 = por %p188, %p189
      %s192 = sadd.s32 %s191, 1
      %p195 = scmp.eq.s32.totalorder %s31, 1
      %p196 = scmp.ne.s32.totalorder %s191, %s193
      %p197 = scmp.eq.s32.totalorder %s31, 0
      %p198 = por %p196, %p197
      %p199 = scmp.ne.s32.totalorder %s191, %s193
      %p200 = scmp.eq.s32.totalorder %s36, 1
      %p201 = por %p199, %p200
      %p202 = scmp.ne.s32.totalorder %s193, %s194
      %p203 = scmp.eq.s32.totalorder %s36, 0
      %p204 = por %p202, %p203
      %p205 = scmp.ne.s32.totalorder %s193, %s194
      %p206 = scmp.eq.s32.totalorder %s37, 1
      %p207 = por %p205, %p206
      %p209 = scmp.ne.s32.totalorder %s194, %s208
      %p210 = scmp.eq.s32.totalorder %s37, 0
      %p211 = por %p209, %p210
      %s213 = sadd.s32 %s212, 1
      %p216 = scmp.eq.s32.totalorder %s31, 1
      %p217 = scmp.ne.s32.totalorder %s212, %s214
      %p218 = scmp.eq.s32.totalorder %s31, 0
      %p219 = por %p217, %p218
      %p220 = scmp.ne.s32.totalorder %s212, %s214
      %p221 = scmp.eq.s32.totalorder %s36, 1
      %p222 = por %p220, %p221
      %p223 = scmp.ne.s32.totalorder %s214, %s215
      %p224 = scmp.eq.s32.totalorder %s36, 0
      %p225 = por %p223, %p224
      %p226 = scmp.ne.s32.totalorder %s214, %s215
      %p227 = scmp.eq.s32.totalorder %s37, 1
      %p228 = por %p226, %p227
      %p230 = scmp.ne.s32.totalorder %s215, %s229
      %p231 = scmp.eq.s32.totalorder %s37, 0
      %p232 = por %p230, %p231
      %s234 = sadd.s32 %s233, 1
      %p237 = scmp.eq.s32.totalorder %s31, 1
      %p238 = scmp.ne.s32.totalorder %s233, %s235
      %p239 = scmp.eq.s32.totalorder %s31, 0
      %p240 = por %p238, %p239
      %p241 = scmp.ne.s32.totalorder %s233, %s235
      %p242 = scmp.eq.s32.totalorder %s36, 1
      %p243 = por %p241, %p242
      %p244 = scmp.ne.s32.totalorder %s235, %s236
      %p245 = scmp.eq.s32.totalorder %s36, 0
      %p246 = por %p244, %p245
      %p247 = scmp.ne.s32.totalorder %s235, %s236
      %p248 = scmp.eq.s32.totalorder %s37, 1
      %p249 = por %p247, %p248
      %p251 = scmp.ne.s32.totalorder %s236, %s250
      %p252 = scmp.eq.s32.totalorder %s37, 0
      %p253 = por %p251, %p252
      %s255 = sadd.s32 %s254, 1
      %p258 = scmp.eq.s32.totalorder %s31, 1
      %p259 = scmp.ne.s32.totalorder %s254, %s256
      %p260 = scmp.eq.s32.totalorder %s31, 0
      %p261 = por %p259, %p260
      %p262 = scmp.ne.s32.totalorder %s254, %s256
      %p263 = scmp.eq.s32.totalorder %s36, 1
      %p264 = por %p262, %p263
      %p265 = scmp.ne.s32.totalorder %s256, %s257
      %p266 = scmp.eq.s32.totalorder %s36, 0
      %p267 = por %p265, %p266
      %p268 = scmp.ne.s32.totalorder %s256, %s257
      %p269 = scmp.eq.s32.totalorder %s37, 1
      %p270 = por %p268, %p269
      %p272 = scmp.ne.s32.totalorder %s257, %s271
      %p273 = scmp.eq.s32.totalorder %s37, 0
      %p274 = por %p272, %p273
      %s276 = sadd.s32 %s275, 1
      %p279 = scmp.eq.s32.totalorder %s31, 1
      %p280 = scmp.ne.s32.totalorder %s275, %s277
      %p281 = scmp.eq.s32.totalorder %s31, 0
      %p282 = por %p280, %p281
      %p283 = scmp.ne.s32.totalorder %s275, %s277
      %p284 = scmp.eq.s32.totalorder %s36, 1
      %p285 = por %p283, %p284
      %p286 = scmp.ne.s32.totalorder %s277, %s278
      %p287 = scmp.eq.s32.totalorder %s36, 0
      %p288 = por %p286, %p287
      %p289 = scmp.ne.s32.totalorder %s277, %s278
      %p290 = scmp.eq.s32.totalorder %s37, 1
      %p291 = por %p289, %p290
      %p293 = scmp.ne.s32.totalorder %s278, %s292
      %p294 = scmp.eq.s32.totalorder %s37, 0
      %p295 = por %p293, %p294
      %s297 = sadd.s32 %s296, 1
      %p300 = scmp.eq.s32.totalorder %s31, 1
      %p301 = scmp.ne.s32.totalorder %s296, %s298
      %p302 = scmp.eq.s32.totalorder %s31, 0
      %p303 = por %p301, %p302
      %p304 = scmp.ne.s32.totalorder %s296, %s298
      %p305 = scmp.eq.s32.totalorder %s36, 1
      %p306 = por %p304, %p305
      %p307 = scmp.ne.s32.totalorder %s298, %s299
      %p308 = scmp.eq.s32.totalorder %s36, 0
      %p309 = por %p307, %p308
      %p310 = scmp.ne.s32.totalorder %s298, %s299
      %p311 = scmp.eq.s32.totalorder %s37, 1
      %p312 = por %p310, %p311
      %p314 = scmp.ne.s32.totalorder %s299, %s313
      %p315 = scmp.eq.s32.totalorder %s37, 0
      %p316 = por %p314, %p315
      %s318 = sadd.s32 %s317, 1
      %p321 = scmp.eq.s32.totalorder %s31, 1
      %p322 = scmp.ne.s32.totalorder %s317, %s319
      %p323 = scmp.eq.s32.totalorder %s31, 0
      %p324 = por %p322, %p323
      %p325 = scmp.ne.s32.totalorder %s317, %s319
      %p326 = scmp.eq.s32.totalorder %s36, 1
      %p327 = por %p325, %p326
      %p328 = scmp.ne.s32.totalorder %s319, %s320
      %p329 = scmp.eq.s32.totalorder %s36, 0
      %p330 = por %p328, %p329
      %p331 = scmp.ne.s32.totalorder %s319, %s320
      %p332 = scmp.eq.s32.totalorder %s37, 1
      %p333 = por %p331, %p332
      %p335 = scmp.ne.s32.totalorder %s320, %s334
      %p336 = scmp.eq.s32.totalorder %s37, 0
      %p337 = por %p335, %p336
      %s339 = sadd.s32 %s338, 1
      %p342 = scmp.eq.s32.totalorder %s31, 1
      %p343 = scmp.ne.s32.totalorder %s338, %s340
      %p344 = scmp.eq.s32.totalorder %s31, 0
      %p345 = por %p343, %p344
      %p346 = scmp.ne.s32.totalorder %s338, %s340
      %p347 = scmp.eq.s32.totalorder %s36, 1
      %p348 = por %p346, %p347
      %p349 = scmp.ne.s32.totalorder %s340, %s341
      %p350 = scmp.eq.s32.totalorder %s36, 0
      %p351 = por %p349, %p350
      %p352 = scmp.ne.s32.totalorder %s340, %s341
      %p353 = scmp.eq.s32.totalorder %s37, 1
      %p354 = por %p352, %p353
      %p356 = scmp.ne.s32.totalorder %s341, %s355
      %p357 = scmp.eq.s32.totalorder %s37, 0
      %p358 = por %p356, %p357
      %s359 = ssub.s32 %s31, %s38
      %p360 = scmp.eq.s32.totalorder %s359, 0
      %s362 = sadd.s32 %s361, 1
      %s363 = scalar_select %p360, %s361, %s362
      %p366 = pneg %p360
      %p367 = scmp.eq.s32.totalorder %s31, 1
      %p368 = por %p366, %p367
      %p369 = scmp.ne.s32.totalorder %s361, %s364
      %p370 = scmp.eq.s32.totalorder %s31, 0
      %p371 = por %p369, %p370
      %p372 = scmp.ne.s32.totalorder %s361, %s364
      %p373 = scmp.eq.s32.totalorder %s36, 1
      %p374 = por %p372, %p373
      %p375 = scmp.ne.s32.totalorder %s364, %s365
      %p376 = scmp.eq.s32.totalorder %s36, 0
      %p377 = por %p375, %p376
      %p378 = scmp.ne.s32.totalorder %s364, %s365
      %p379 = scmp.eq.s32.totalorder %s37, 1
      %p380 = por %p378, %p379
      %p382 = scmp.ne.s32.totalorder %s365, %s381
      %p383 = scmp.eq.s32.totalorder %s37, 0
      %p384 = por %p382, %p383
      %p385 = scmp.le.s32.totalorder 1, %s31
      %p386 = scmp.lt.s32.totalorder %s31, 3
      %p387 = pnand %p385, %p386
      %p388 = pneg %p387
      // Predicated region
      $region9: #{tpu_custom_call.1} parent=5 // pred_check
        _
      $region10: #{tpu_custom_call.1} parent=5 // pred_check_branch
        %390 = sbr.rel (%p387) target = $region12
      $region11: #{tpu_custom_call.1} parent=5 // pred_region
        %s391 = ssub.s32 %s31, 1
        // Predicated region
        $region13: #{tpu_custom_call.1} parent=11 // pred_check
          %p392 = pneg %p78
        $region14: #{tpu_custom_call.1} parent=11 // pred_check_branch
          %394 = sbr.rel (%p392) target = $region16
        $region15: #{tpu_custom_call.1} parent=11 // pred_region
          _
        $region16: #{tpu_custom_call.1} parent=11 // pred_fallthru
          _
        // Predicated region
        $region17: #{tpu_custom_call.1} parent=11 // pred_check
          %p395 = pneg %p99
        $region18: #{tpu_custom_call.1} parent=11 // pred_check_branch
          %397 = sbr.rel (%p395) target = $region20
        $region19: #{tpu_custom_call.1} parent=11 // pred_region
          %399 = vsyncadd [#allocation6], 0
          %s401 = sshll.u32 %s2, 4
          %s402 = int_to_ptr.hbm [resolvable:$true] %s401
          %s403 = sshll.u32 [#allocation5], 4
          %s404 = int_to_ptr.vmem [resolvable:$true] %s403
          %406 = dma.hbm_to_vmem [thread:$0]  %s402, 32, %s404, [#allocation6]
        $region20: #{tpu_custom_call.1} parent=11 // pred_fallthru
          _
        // Predicated region
        $region21: #{tpu_custom_call.1} parent=11 // pred_check
          %p407 = pneg %p120
        $region22: #{tpu_custom_call.1} parent=11 // pred_check_branch
          %409 = sbr.rel (%p407) target = $region24
        $region23: #{tpu_custom_call.1} parent=11 // pred_region
          _
        $region24: #{tpu_custom_call.1} parent=11 // pred_fallthru
          _
        // Predicated region
        $region25: #{tpu_custom_call.1} parent=11 // pred_check
          %p410 = pneg %p141
        $region26: #{tpu_custom_call.1} parent=11 // pred_check_branch
          %412 = sbr.rel (%p410) target = $region28
        $region27: #{tpu_custom_call.1} parent=11 // pred_region
          _
        $region28: #{tpu_custom_call.1} parent=11 // pred_fallthru
          _
        // Predicated region
        $region29: #{tpu_custom_call.1} parent=11 // pred_check
          %p413 = pneg %p162
        $region30: #{tpu_custom_call.1} parent=11 // pred_check_branch
          %415 = sbr.rel (%p413) target = $region32
        $region31: #{tpu_custom_call.1} parent=11 // pred_region
          %417 = vsyncadd [#allocation6], 0
          %s419 = sshll.u32 %s5, 4
          %s420 = int_to_ptr.hbm [resolvable:$true] %s419
          %s421 = sshll.u32 [#allocation7], 4
          %s422 = int_to_ptr.vmem [resolvable:$true] %s421
          %424 = dma.hbm_to_vmem [thread:$0]  %s420, 16, %s422, [#allocation6]
        $region32: #{tpu_custom_call.1} parent=11 // pred_fallthru
          _
        // Predicated region
        $region33: #{tpu_custom_call.1} parent=11 // pred_check
          %p425 = pneg %p183
        $region34: #{tpu_custom_call.1} parent=11 // pred_check_branch
          %427 = sbr.rel (%p425) target = $region36
        $region35: #{tpu_custom_call.1} parent=11 // pred_region
          %429 = vsyncadd [#allocation9], 0
          %s430 = sshll.u32 %s6, 4
          %s431 = int_to_ptr.hbm [resolvable:$true] %s430
          %s432 = sshll.u32 [#allocation8], 4
          %s433 = int_to_ptr.vmem [resolvable:$true] %s432
          %438 = dma.hbm_to_vmem [thread:$0]  %s431, 8192, %s433, [#allocation9], 256, 256, 16
        $region36: #{tpu_custom_call.1} parent=11 // pred_fallthru
          _
        // Predicated region
        $region37: #{tpu_custom_call.1} parent=11 // pred_check
          %p439 = pneg %p204
        $region38: #{tpu_custom_call.1} parent=11 // pred_check_branch
          %441 = sbr.rel (%p439) target = $region40
        $region39: #{tpu_custom_call.1} parent=11 // pred_region
          _
        $region40: #{tpu_custom_call.1} parent=11 // pred_fallthru
          _
        // Predicated region
        $region41: #{tpu_custom_call.1} parent=11 // pred_check
          %p442 = pneg %p225
        $region42: #{tpu_custom_call.1} parent=11 // pred_check_branch
          %444 = sbr.rel (%p442) target = $region44
        $region43: #{tpu_custom_call.1} parent=11 // pred_region
          %446 = vsyncadd [#allocation9], 0
          %s447 = sshll.u32 %s8, 4
          %s448 = int_to_ptr.hbm [resolvable:$true] %s447
          %s449 = sshll.u32 [#allocation10], 4
          %s450 = int_to_ptr.vmem [resolvable:$true] %s449
          %455 = dma.hbm_to_vmem [thread:$0]  %s448, 8192, %s450, [#allocation9], 256, 256, 16
        $region44: #{tpu_custom_call.1} parent=11 // pred_fallthru
          _
        // Predicated region
        $region45: #{tpu_custom_call.1} parent=11 // pred_check
          %p456 = pneg %p246
        $region46: #{tpu_custom_call.1} parent=11 // pred_check_branch
          %458 = sbr.rel (%p456) target = $region48
        $region47: #{tpu_custom_call.1} parent=11 // pred_region
          %460 = vsyncadd [#allocation12], 0
          %s461 = sshll.u32 %s9, 4
          %s462 = int_to_ptr.hbm [resolvable:$true] %s461
          %s463 = sshll.u32 [#allocation11], 4
          %s464 = int_to_ptr.vmem [resolvable:$true] %s463
          %469 = dma.hbm_to_vmem [thread:$0]  %s462, 8192, %s464, [#allocation12], 256, 256, 16
        $region48: #{tpu_custom_call.1} parent=11 // pred_fallthru
          _
        // Predicated region
        $region49: #{tpu_custom_call.1} parent=11 // pred_check
          %p470 = pneg %p267
        $region50: #{tpu_custom_call.1} parent=11 // pred_check_branch
          %472 = sbr.rel (%p470) target = $region52
        $region51: #{tpu_custom_call.1} parent=11 // pred_region
          %474 = vsyncadd [#allocation12], 0
          %s475 = sshll.u32 %s10, 4
          %s476 = int_to_ptr.hbm [resolvable:$true] %s475
          %s477 = sshll.u32 [#allocation13], 4
          %s478 = int_to_ptr.vmem [resolvable:$true] %s477
          %483 = dma.hbm_to_vmem [thread:$0]  %s476, 8192, %s478, [#allocation12], 256, 256, 16
        $region52: #{tpu_custom_call.1} parent=11 // pred_fallthru
          _
        // Predicated region
        $region53: #{tpu_custom_call.1} parent=11 // pred_check
          %p484 = pneg %p288
        $region54: #{tpu_custom_call.1} parent=11 // pred_check_branch
          %486 = sbr.rel (%p484) target = $region56
        $region55: #{tpu_custom_call.1} parent=11 // pred_region
          %488 = vsyncadd [#allocation15], 0
          %s489 = sshll.u32 %s11, 4
          %s490 = int_to_ptr.hbm [resolvable:$true] %s489
          %s491 = sshll.u32 [#allocation14], 4
          %s492 = int_to_ptr.vmem [resolvable:$true] %s491
          %497 = dma.hbm_to_vmem [thread:$0]  %s490, 8192, %s492, [#allocation15], 256, 256, 16
        $region56: #{tpu_custom_call.1} parent=11 // pred_fallthru
          _
        // Predicated region
        $region57: #{tpu_custom_call.1} parent=11 // pred_check
          %p498 = pneg %p309
        $region58: #{tpu_custom_call.1} parent=11 // pred_check_branch
          %500 = sbr.rel (%p498) target = $region60
        $region59: #{tpu_custom_call.1} parent=11 // pred_region
          _
        $region60: #{tpu_custom_call.1} parent=11 // pred_fallthru
          _
        // Predicated region
        $region61: #{tpu_custom_call.1} parent=11 // pred_check
          %p501 = pneg %p330
        $region62: #{tpu_custom_call.1} parent=11 // pred_check_branch
          %503 = sbr.rel (%p501) target = $region64
        $region63: #{tpu_custom_call.1} parent=11 // pred_region
          _
        $region64: #{tpu_custom_call.1} parent=11 // pred_fallthru
          _
        // Predicated region
        $region65: #{tpu_custom_call.1} parent=11 // pred_check
          %p504 = pneg %p351
        $region66: #{tpu_custom_call.1} parent=11 // pred_check_branch
          %506 = sbr.rel (%p504) target = $region68
        $region67: #{tpu_custom_call.1} parent=11 // pred_region
          _
        $region68: #{tpu_custom_call.1} parent=11 // pred_fallthru
          _
      $region12: #{tpu_custom_call.1} parent=5 // pred_fallthru
        _
      %p507 = scmp.lt.s32.totalorder %s31, 2
      // Predicated region
      $region69: #{tpu_custom_call.1} parent=5 // pred_check
        %p508 = pneg %p507
      $region70: #{tpu_custom_call.1} parent=5 // pred_check_branch
        %510 = sbr.rel (%p508) target = $region72
      $region71: #{tpu_custom_call.1} parent=5 // pred_region
        // Predicated region
        $region73: #{tpu_custom_call.1} parent=71 // pred_check
          %p511 = pneg %p51
        $region74: #{tpu_custom_call.1} parent=71 // pred_check_branch
          %513 = sbr.rel (%p511) target = $region76
        $region75: #{tpu_custom_call.1} parent=71 // pred_region
          %s514 = sand.u32 %s41, 1
          %s515 = scalar_lea.sflag [#allocation3], %s514
          %s516 = sand.u32 %s41, 1
          %s517 = smul.addr %s516, 16
          %s518 = scalar_lea.vmem [#allocation2], %s517
          %520 = vsyncadd %s515, 0
          %s521 = smul.addr %s31, 2
          %s522 = smul.addr %s521, 8
          %s523 = scalar_lea.hbm %s0, %s522
          %s525 = sshll.u32 %s523, 4
          %s526 = int_to_ptr.hbm [resolvable:$true] %s525
          %s527 = sshll.u32 %s518, 4
          %s528 = int_to_ptr.vmem [resolvable:$true] %s527
          %530 = dma.hbm_to_vmem [thread:$0]  %s526, 256, %s528, %s515
        $region76: #{tpu_custom_call.1} parent=71 // pred_fallthru
          _
      $region72: #{tpu_custom_call.1} parent=5 // pred_fallthru
        _
      %p531 = scmp.le.s32.totalorder 1, %s31
      %p532 = scmp.lt.s32.totalorder %s31, 3
      %p533 = pnand %p531, %p532
      %p534 = pneg %p533
      // Predicated region
      $region77: #{tpu_custom_call.1} parent=5 // pred_check
        _
      $region78: #{tpu_custom_call.1} parent=5 // pred_check_branch
        %536 = sbr.rel (%p533) target = $region80
      $region79: #{tpu_custom_call.1} parent=5 // pred_region
        %s537 = ssub.s32 %s31, 1
        %s538 = sand.u32 %s44, 1
        %s539 = scalar_lea.sflag [#allocation3], %s538
        %s540 = sand.u32 %s44, 1
        %s541 = smul.addr %s540, 16
        %s542 = scalar_lea.vmem [#allocation2], %s541
        // Predicated region
        $region81: #{tpu_custom_call.1} parent=79 // pred_check
          %p543 = pneg %p57
        $region82: #{tpu_custom_call.1} parent=79 // pred_check_branch
          %545 = sbr.rel (%p543) target = $region84
        $region83: #{tpu_custom_call.1} parent=79 // pred_region
          %547 = dma.done %s539, 256
        $region84: #{tpu_custom_call.1} parent=79 // pred_fallthru
          _
        // Predicated region
        $region85: #{tpu_custom_call.1} parent=79 // pred_check
          %p548 = pneg %p99
        $region86: #{tpu_custom_call.1} parent=79 // pred_check_branch
          %550 = sbr.rel (%p548) target = $region88
        $region87: #{tpu_custom_call.1} parent=79 // pred_region
          %552 = dma.done [#allocation6], 32
        $region88: #{tpu_custom_call.1} parent=79 // pred_fallthru
          _
        // Predicated region
        $region89: #{tpu_custom_call.1} parent=79 // pred_check
          %p553 = pneg %p162
        $region90: #{tpu_custom_call.1} parent=79 // pred_check_branch
          %555 = sbr.rel (%p553) target = $region92
        $region91: #{tpu_custom_call.1} parent=79 // pred_region
          %557 = dma.done [#allocation6], 16
        $region92: #{tpu_custom_call.1} parent=79 // pred_fallthru
          _
        // Predicated region
        $region93: #{tpu_custom_call.1} parent=79 // pred_check
          %p558 = pneg %p183
        $region94: #{tpu_custom_call.1} parent=79 // pred_check_branch
          %560 = sbr.rel (%p558) target = $region96
        $region95: #{tpu_custom_call.1} parent=79 // pred_region
          %562 = dma.done [#allocation9], 8192
        $region96: #{tpu_custom_call.1} parent=79 // pred_fallthru
          _
        // Predicated region
        $region97: #{tpu_custom_call.1} parent=79 // pred_check
          %p563 = pneg %p225
        $region98: #{tpu_custom_call.1} parent=79 // pred_check_branch
          %565 = sbr.rel (%p563) target = $region100
        $region99: #{tpu_custom_call.1} parent=79 // pred_region
          %567 = dma.done [#allocation9], 8192
        $region100: #{tpu_custom_call.1} parent=79 // pred_fallthru
          _
        // Predicated region
        $region101: #{tpu_custom_call.1} parent=79 // pred_check
          %p568 = pneg %p246
        $region102: #{tpu_custom_call.1} parent=79 // pred_check_branch
          %570 = sbr.rel (%p568) target = $region104
        $region103: #{tpu_custom_call.1} parent=79 // pred_region
          %572 = dma.done [#allocation12], 8192
        $region104: #{tpu_custom_call.1} parent=79 // pred_fallthru
          _
        // Predicated region
        $region105: #{tpu_custom_call.1} parent=79 // pred_check
          %p573 = pneg %p267
        $region106: #{tpu_custom_call.1} parent=79 // pred_check_branch
          %575 = sbr.rel (%p573) target = $region108
        $region107: #{tpu_custom_call.1} parent=79 // pred_region
          %577 = dma.done [#allocation12], 8192
        $region108: #{tpu_custom_call.1} parent=79 // pred_fallthru
          _
        // Predicated region
        $region109: #{tpu_custom_call.1} parent=79 // pred_check
          %p578 = pneg %p288
        $region110: #{tpu_custom_call.1} parent=79 // pred_check_branch
          %580 = sbr.rel (%p578) target = $region112
        $region111: #{tpu_custom_call.1} parent=79 // pred_region
          %582 = dma.done [#allocation15], 8192
        $region112: #{tpu_custom_call.1} parent=79 // pred_fallthru
          _
        %s583 = sand.u32 %s44, 1
        %s584 = scalar_lea.sflag [#allocation3], %s583
        %s585 = sand.u32 %s44, 1
        %s586 = smul.addr %s585, 16
        %s587 = scalar_lea.vmem [#allocation2], %s586
        %p588 = pneg %p57
        %p589 = pneg %p54
        %p590 = pneg %p78
        %p591 = pneg %p75
        %p592 = pneg %p99
        %p593 = pneg %p96
        %p594 = pneg %p120
        %p595 = pneg %p117
        %p596 = pneg %p141
        %p597 = pneg %p138
        %p598 = pneg %p162
        %p599 = pneg %p159
        %p600 = pneg %p183
        %p601 = pneg %p180
        %p602 = pneg %p204
        %p603 = pneg %p201
        %p604 = pneg %p225
        %p605 = pneg %p222
        %p606 = pneg %p246
        %p607 = pneg %p243
        %p608 = pneg %p267
        %p609 = pneg %p264
        %p610 = pneg %p288
        %p611 = pneg %p285
        %p612 = pneg %p309
        %p613 = pneg %p306
        %p614 = pneg %p330
        %p615 = pneg %p327
        %p616 = pneg %p351
        %p617 = pneg %p348
        %p618 = pneg %p377
        %p619 = pneg %p374
        %s620 = sand.u32 %s364, 1
        %s621 = scalar_lea.sflag [#allocation4], %s620
        %s622 = sand.u32 %s364, 1
        %s623 = scalar_lea.vmem [#allocation16], %s622
        %v624 = vld [vmem:[%s542] sm:$0xff]
        %v625 = vld [vmem:[%s542 + $0x8] sm:$0xff]
        %v626 = vrot.slane %v624, 4
        %v627 = vadd.f32 %v624, %v626
        %v628 = vrot.slane %v627, 2
        %v629 = vadd.f32 %v627, %v628
        %v630 = vrot.slane %v629, 1
        %v631 = vadd.f32 %v629, %v630
        %v632 = vrot.slane %v625, 4
        %v633 = vadd.f32 %v625, %v632
        %v634 = vrot.slane %v633, 2
        %v635 = vadd.f32 %v633, %v634
        %v636 = vrot.slane %v635, 1
        %v637 = vadd.f32 %v635, %v636
        %v638 = vrcp.pop 8.0
        %v639 = vmul.f32 8.0, %v638
        %v640 = vsub.f32 1.0, %v639
        %v641 = vmul.f32 %v638, %v640
        %v642 = vadd.f32 %v638, %v641
        %vm643 = vweird.f32 %v638
        %v644 = vsel %vm643, %v638, %v642
        %v645 = vmul.f32 %v631, %v644
        %v646 = vmul.f32 %v637, %v644
        %v647 = vld [vmem:[%s1] sm:$0xff]
        %v648 = vld [vmem:[%s1 + $0x8] sm:$0xff]
        %v649 = vld [vmem:[%s1 + $0x10] sm:$0xff]
        %v650 = vld [vmem:[%s1 + $0x18] sm:$0xff]
        %v651 = vld [vmem:[%s1 + $0x20] sm:$0xff]
        %v652 = vld [vmem:[%s1 + $0x28] sm:$0xff]
        %v653 = vld [vmem:[%s1 + $0x30] sm:$0xff]
        %v654 = vld [vmem:[%s1 + $0x38] sm:$0xff]
        %v655 = vld [vmem:[%s1 + $0x40] sm:$0xff]
        %v656 = vld [vmem:[%s1 + $0x48] sm:$0xff]
        %v657 = vld [vmem:[%s1 + $0x50] sm:$0xff]
        %v658 = vld [vmem:[%s1 + $0x58] sm:$0xff]
        %v659 = vld [vmem:[%s1 + $0x60] sm:$0xff]
        %v660 = vld [vmem:[%s1 + $0x68] sm:$0xff]
        %v661 = vld [vmem:[%s1 + $0x70] sm:$0xff]
        %v662 = vld [vmem:[%s1 + $0x78] sm:$0xff]
        %v663 = vld [vmem:[%s1 + $0x80] sm:$0xff]
        %v664 = vld [vmem:[%s1 + $0x88] sm:$0xff]
        %v665 = vld [vmem:[%s1 + $0x90] sm:$0xff]
        %v666 = vld [vmem:[%s1 + $0x98] sm:$0xff]
        %v667 = vld [vmem:[%s1 + $0xa0] sm:$0xff]
        %v668 = vld [vmem:[%s1 + $0xa8] sm:$0xff]
        %v669 = vld [vmem:[%s1 + $0xb0] sm:$0xff]
        %v670 = vld [vmem:[%s1 + $0xb8] sm:$0xff]
        %v671 = vld [vmem:[%s1 + $0xc0] sm:$0xff]
        %v672 = vld [vmem:[%s1 + $0xc8] sm:$0xff]
        %v673 = vld [vmem:[%s1 + $0xd0] sm:$0xff]
        %v674 = vld [vmem:[%s1 + $0xd8] sm:$0xff]
        %v675 = vld [vmem:[%s1 + $0xe0] sm:$0xff]
        %v676 = vld [vmem:[%s1 + $0xe8] sm:$0xff]
        %v677 = vld [vmem:[%s1 + $0xf0] sm:$0xff]
        %v678 = vld [vmem:[%s1 + $0xf8] sm:$0xff]
        %v679 = vld [vmem:[%s1 + $0x100] sm:$0xff]
        %v680 = vld [vmem:[%s1 + $0x108] sm:$0xff]
        %v681 = vld [vmem:[%s1 + $0x110] sm:$0xff]
        %v682 = vld [vmem:[%s1 + $0x118] sm:$0xff]
        %v683 = vld [vmem:[%s1 + $0x120] sm:$0xff]
        %v684 = vld [vmem:[%s1 + $0x128] sm:$0xff]
        %v685 = vld [vmem:[%s1 + $0x130] sm:$0xff]
        %v686 = vld [vmem:[%s1 + $0x138] sm:$0xff]
        %v687 = vld [vmem:[%s1 + $0x140] sm:$0xff]
        %v688 = vld [vmem:[%s1 + $0x148] sm:$0xff]
        %v689 = vld [vmem:[%s1 + $0x150] sm:$0xff]
        %v690 = vld [vmem:[%s1 + $0x158] sm:$0xff]
        %v691 = vld [vmem:[%s1 + $0x160] sm:$0xff]
        %v692 = vld [vmem:[%s1 + $0x168] sm:$0xff]
        %v693 = vld [vmem:[%s1 + $0x170] sm:$0xff]
        %v694 = vld [vmem:[%s1 + $0x178] sm:$0xff]
        %v695 = vld [vmem:[%s1 + $0x180] sm:$0xff]
        %v696 = vld [vmem:[%s1 + $0x188] sm:$0xff]
        %v697 = vld [vmem:[%s1 + $0x190] sm:$0xff]
        %v698 = vld [vmem:[%s1 + $0x198] sm:$0xff]
        %v699 = vld [vmem:[%s1 + $0x1a0] sm:$0xff]
        %v700 = vld [vmem:[%s1 + $0x1a8] sm:$0xff]
        %v701 = vld [vmem:[%s1 + $0x1b0] sm:$0xff]
        %v702 = vld [vmem:[%s1 + $0x1b8] sm:$0xff]
        %v703 = vld [vmem:[%s1 + $0x1c0] sm:$0xff]
        %v704 = vld [vmem:[%s1 + $0x1c8] sm:$0xff]
        %v705 = vld [vmem:[%s1 + $0x1d0] sm:$0xff]
        %v706 = vld [vmem:[%s1 + $0x1d8] sm:$0xff]
        %v707 = vld [vmem:[%s1 + $0x1e0] sm:$0xff]
        %v708 = vld [vmem:[%s1 + $0x1e8] sm:$0xff]
        %v709 = vld [vmem:[%s1 + $0x1f0] sm:$0xff]
        %v710 = vld [vmem:[%s1 + $0x1f8] sm:$0xff]
        %v711 = vld [vmem:[#allocation5] sm:$0x3]
        %v713 = vperm.slane %v711, 0
        %v714 = vperm.slane %v711, 1
        %717 = vmatpush.msra.mxu0 %v677
        %718 = vmatpush.msra.mxu0 %v675
        %719 = vmatpush.msra.mxu0 %v673
        %720 = vmatpush.msra.mxu0 %v671
        %721 = vmatpush.msra.mxu0 %v669
        %722 = vmatpush.msra.mxu0 %v667
        %723 = vmatpush.msra.mxu0 %v665
        %724 = vmatpush.msra.mxu0 %v663
        %725 = vmatpush.msra.mxu0 %v661
        %726 = vmatpush.msra.mxu0 %v659
        %727 = vmatpush.msra.mxu0 %v657
        %728 = vmatpush.msra.mxu0 %v655
        %729 = vmatpush.msra.mxu0 %v653
        %730 = vmatpush.msra.mxu0 %v651
        %731 = vmatpush.msra.mxu0 %v649
        %732 = vmatpush.msra.mxu0 %v647
        %733 = vmatmul.f32.gmra.mxu0 %v645
        %v734 = vpop.f32.mrf.mxu0
        %v735 = vadd.f32 %v713, %v734
        %736 = vdwg.mxu0
        %737 = vmatpush.msra.mxu0 %v709
        %738 = vmatpush.msra.mxu0 %v707
        %739 = vmatpush.msra.mxu0 %v705
        %740 = vmatpush.msra.mxu0 %v703
        %741 = vmatpush.msra.mxu0 %v701
        %742 = vmatpush.msra.mxu0 %v699
        %743 = vmatpush.msra.mxu0 %v697
        %744 = vmatpush.msra.mxu0 %v695
        %745 = vmatpush.msra.mxu0 %v693
        %746 = vmatpush.msra.mxu0 %v691
        %747 = vmatpush.msra.mxu0 %v689
        %748 = vmatpush.msra.mxu0 %v687
        %749 = vmatpush.msra.mxu0 %v685
        %750 = vmatpush.msra.mxu0 %v683
        %751 = vmatpush.msra.mxu0 %v681
        %752 = vmatpush.msra.mxu0 %v679
        %753 = vmatmul.f32.gmra.mxu0 %v646
        %v754 = vpop.f32.mrf.mxu0
        %v755 = vadd.f32 %v735, %v754
        %756 = vdwg.mxu0
        %757 = vmatpush.msra.mxu0 %v678
        %758 = vmatpush.msra.mxu0 %v676
        %759 = vmatpush.msra.mxu0 %v674
        %760 = vmatpush.msra.mxu0 %v672
        %761 = vmatpush.msra.mxu0 %v670
        %762 = vmatpush.msra.mxu0 %v668
        %763 = vmatpush.msra.mxu0 %v666
        %764 = vmatpush.msra.mxu0 %v664
        %765 = vmatpush.msra.mxu0 %v662
        %766 = vmatpush.msra.mxu0 %v660
        %767 = vmatpush.msra.mxu0 %v658
        %768 = vmatpush.msra.mxu0 %v656
        %769 = vmatpush.msra.mxu0 %v654
        %770 = vmatpush.msra.mxu0 %v652
        %771 = vmatpush.msra.mxu0 %v650
        %772 = vmatpush.msra.mxu0 %v648
        %773 = vmatmul.f32.gmra.mxu0 %v645
        %v774 = vpop.f32.mrf.mxu0
        %v775 = vadd.f32 %v714, %v774
        %776 = vdwg.mxu0
        %777 = vmatpush.msra.mxu0 %v710
        %778 = vmatpush.msra.mxu0 %v708
        %779 = vmatpush.msra.mxu0 %v706
        %780 = vmatpush.msra.mxu0 %v704
        %781 = vmatpush.msra.mxu0 %v702
        %782 = vmatpush.msra.mxu0 %v700
        %783 = vmatpush.msra.mxu0 %v698
        %784 = vmatpush.msra.mxu0 %v696
        %785 = vmatpush.msra.mxu0 %v694
        %786 = vmatpush.msra.mxu0 %v692
        %787 = vmatpush.msra.mxu0 %v690
        %788 = vmatpush.msra.mxu0 %v688
        %789 = vmatpush.msra.mxu0 %v686
        %790 = vmatpush.msra.mxu0 %v684
        %791 = vmatpush.msra.mxu0 %v682
        %792 = vmatpush.msra.mxu0 %v680
        %793 = vmatmul.f32.gmra.mxu0 %v646
        %v794 = vpop.f32.mrf.mxu0
        %v795 = vadd.f32 %v775, %v794
        %796 = vdwg.mxu0
        %vm797 = vcmp.gt.f32.partialorder %v755, 0.0
        %vm798 = vcmp.gt.f32.partialorder %v795, 0.0
        %v799 = vmul.f32 %v755, 0.2
        %v800 = vmul.f32 %v795, 0.2
        %v801 = vsel %vm797, %v755, %v799
        %v802 = vsel %vm798, %v795, %v800
        %v803 = vld [vmem:[%s4] sm:$0xff]
        %v804 = vld [vmem:[%s4 + $0x8] sm:$0xff]
        %v805 = vld [vmem:[%s4 + $0x10] sm:$0xff]
        %v806 = vld [vmem:[%s4 + $0x18] sm:$0xff]
        %v807 = vld [vmem:[%s4 + $0x20] sm:$0xff]
        %v808 = vld [vmem:[%s4 + $0x28] sm:$0xff]
        %v809 = vld [vmem:[%s4 + $0x30] sm:$0xff]
        %v810 = vld [vmem:[%s4 + $0x38] sm:$0xff]
        %v811 = vld [vmem:[%s4 + $0x40] sm:$0xff]
        %v812 = vld [vmem:[%s4 + $0x48] sm:$0xff]
        %v813 = vld [vmem:[%s4 + $0x50] sm:$0xff]
        %v814 = vld [vmem:[%s4 + $0x58] sm:$0xff]
        %v815 = vld [vmem:[%s4 + $0x60] sm:$0xff]
        %v816 = vld [vmem:[%s4 + $0x68] sm:$0xff]
        %v817 = vld [vmem:[%s4 + $0x70] sm:$0xff]
        %v818 = vld [vmem:[%s4 + $0x78] sm:$0xff]
        %v819 = vld [vmem:[%s4 + $0x80] sm:$0xff]
        %v820 = vld [vmem:[%s4 + $0x88] sm:$0xff]
        %v821 = vld [vmem:[%s4 + $0x90] sm:$0xff]
        %v822 = vld [vmem:[%s4 + $0x98] sm:$0xff]
        %v823 = vld [vmem:[%s4 + $0xa0] sm:$0xff]
        %v824 = vld [vmem:[%s4 + $0xa8] sm:$0xff]
        %v825 = vld [vmem:[%s4 + $0xb0] sm:$0xff]
        %v826 = vld [vmem:[%s4 + $0xb8] sm:$0xff]
        %v827 = vld [vmem:[%s4 + $0xc0] sm:$0xff]
        %v828 = vld [vmem:[%s4 + $0xc8] sm:$0xff]
        %v829 = vld [vmem:[%s4 + $0xd0] sm:$0xff]
        %v830 = vld [vmem:[%s4 + $0xd8] sm:$0xff]
        %v831 = vld [vmem:[%s4 + $0xe0] sm:$0xff]
        %v832 = vld [vmem:[%s4 + $0xe8] sm:$0xff]
        %v833 = vld [vmem:[%s4 + $0xf0] sm:$0xff]
        %v834 = vld [vmem:[%s4 + $0xf8] sm:$0xff]
        %v835 = vld [vmem:[%s3] sm:$0xff]
        %v836 = vld [vmem:[%s3 + $0x8] sm:$0xff]
        %v837 = vld [vmem:[%s3 + $0x10] sm:$0xff]
        %v838 = vld [vmem:[%s3 + $0x18] sm:$0xff]
        %v839 = vld [vmem:[%s3 + $0x20] sm:$0xff]
        %v840 = vld [vmem:[%s3 + $0x28] sm:$0xff]
        %v841 = vld [vmem:[%s3 + $0x30] sm:$0xff]
        %v842 = vld [vmem:[%s3 + $0x38] sm:$0xff]
        %v843 = vld [vmem:[%s3 + $0x40] sm:$0xff]
        %v844 = vld [vmem:[%s3 + $0x48] sm:$0xff]
        %v845 = vld [vmem:[%s3 + $0x50] sm:$0xff]
        %v846 = vld [vmem:[%s3 + $0x58] sm:$0xff]
        %v847 = vld [vmem:[%s3 + $0x60] sm:$0xff]
        %v848 = vld [vmem:[%s3 + $0x68] sm:$0xff]
        %v849 = vld [vmem:[%s3 + $0x70] sm:$0xff]
        %v850 = vld [vmem:[%s3 + $0x78] sm:$0xff]
        %v851 = vld [vmem:[%s3 + $0x80] sm:$0xff]
        %v852 = vld [vmem:[%s3 + $0x88] sm:$0xff]
        %v853 = vld [vmem:[%s3 + $0x90] sm:$0xff]
        %v854 = vld [vmem:[%s3 + $0x98] sm:$0xff]
        %v855 = vld [vmem:[%s3 + $0xa0] sm:$0xff]
        %v856 = vld [vmem:[%s3 + $0xa8] sm:$0xff]
        %v857 = vld [vmem:[%s3 + $0xb0] sm:$0xff]
        %v858 = vld [vmem:[%s3 + $0xb8] sm:$0xff]
        %v859 = vld [vmem:[%s3 + $0xc0] sm:$0xff]
        %v860 = vld [vmem:[%s3 + $0xc8] sm:$0xff]
        %v861 = vld [vmem:[%s3 + $0xd0] sm:$0xff]
        %v862 = vld [vmem:[%s3 + $0xd8] sm:$0xff]
        %v863 = vld [vmem:[%s3 + $0xe0] sm:$0xff]
        %v864 = vld [vmem:[%s3 + $0xe8] sm:$0xff]
        %v865 = vld [vmem:[%s3 + $0xf0] sm:$0xff]
        %v866 = vld [vmem:[%s3 + $0xf8] sm:$0xff]
        %867 = vmatpush.msra.mxu0 %v850
        %868 = vmatpush.msra.mxu0 %v849
        %869 = vmatpush.msra.mxu0 %v848
        %870 = vmatpush.msra.mxu0 %v847
        %871 = vmatpush.msra.mxu0 %v846
        %872 = vmatpush.msra.mxu0 %v845
        %873 = vmatpush.msra.mxu0 %v844
        %874 = vmatpush.msra.mxu0 %v843
        %875 = vmatpush.msra.mxu0 %v842
        %876 = vmatpush.msra.mxu0 %v841
        %877 = vmatpush.msra.mxu0 %v840
        %878 = vmatpush.msra.mxu0 %v839
        %879 = vmatpush.msra.mxu0 %v838
        %880 = vmatpush.msra.mxu0 %v837
        %881 = vmatpush.msra.mxu0 %v836
        %882 = vmatpush.msra.mxu0 %v835
        %883 = vmatmul.f32.gmra.mxu0 %v801
        %v884 = vpop.f32.mrf.mxu0
        %v885 = vadd.f32 0.0, %v884
        %886 = vdwg.mxu0
        %887 = vmatpush.msra.mxu0 %v866
        %888 = vmatpush.msra.mxu0 %v865
        %889 = vmatpush.msra.mxu0 %v864
        %890 = vmatpush.msra.mxu0 %v863
        %891 = vmatpush.msra.mxu0 %v862
        %892 = vmatpush.msra.mxu0 %v861
        %893 = vmatpush.msra.mxu0 %v860
        %894 = vmatpush.msra.mxu0 %v859
        %895 = vmatpush.msra.mxu0 %v858
        %896 = vmatpush.msra.mxu0 %v857
        %897 = vmatpush.msra.mxu0 %v856
        %898 = vmatpush.msra.mxu0 %v855
        %899 = vmatpush.msra.mxu0 %v854
        %900 = vmatpush.msra.mxu0 %v853
        %901 = vmatpush.msra.mxu0 %v852
        %902 = vmatpush.msra.mxu0 %v851
        %903 = vmatmul.f32.gmra.mxu0 %v802
        %v904 = vpop.f32.mrf.mxu0
        %v905 = vadd.f32 %v885, %v904
        %906 = vdwg.mxu0
        %v907 = vperm.slane %v905, 0
        %908 = vmatpush.msra.mxu0 %v818
        %909 = vmatpush.msra.mxu0 %v817
        %910 = vmatpush.msra.mxu0 %v816
        %911 = vmatpush.msra.mxu0 %v815
        %912 = vmatpush.msra.mxu0 %v814
        %913 = vmatpush.msra.mxu0 %v813
        %914 = vmatpush.msra.mxu0 %v812
        %915 = vmatpush.msra.mxu0 %v811
        %916 = vmatpush.msra.mxu0 %v810
        %917 = vmatpush.msra.mxu0 %v809
        %918 = vmatpush.msra.mxu0 %v808
        %919 = vmatpush.msra.mxu0 %v807
        %920 = vmatpush.msra.mxu0 %v806
        %921 = vmatpush.msra.mxu0 %v805
        %922 = vmatpush.msra.mxu0 %v804
        %923 = vmatpush.msra.mxu0 %v803
        %924 = vmatmul.f32.gmra.mxu0 %v624
        %v925 = vpop.f32.mrf.mxu0
        %v926 = vadd.f32 %v907, %v925
        %927 = vdwg.mxu0
        %928 = vmatpush.msra.mxu0 %v834
        %929 = vmatpush.msra.mxu0 %v833
        %930 = vmatpush.msra.mxu0 %v832
        %931 = vmatpush.msra.mxu0 %v831
        %932 = vmatpush.msra.mxu0 %v830
        %933 = vmatpush.msra.mxu0 %v829
        %934 = vmatpush.msra.mxu0 %v828
        %935 = vmatpush.msra.mxu0 %v827
        %936 = vmatpush.msra.mxu0 %v826
        %937 = vmatpush.msra.mxu0 %v825
        %938 = vmatpush.msra.mxu0 %v824
        %939 = vmatpush.msra.mxu0 %v823
        %940 = vmatpush.msra.mxu0 %v822
        %941 = vmatpush.msra.mxu0 %v821
        %942 = vmatpush.msra.mxu0 %v820
        %943 = vmatpush.msra.mxu0 %v819
        %944 = vmatmul.f32.gmra.mxu0 %v625
        %v945 = vpop.f32.mrf.mxu0
        %v946 = vadd.f32 %v926, %v945
        %947 = vdwg.mxu0
        %v948 = vld [vmem:[#allocation7] sm:$0x1]
        %v950 = vperm.slane %v948, 0
        %v952 = vadd.f32 %v946, %v950
        %v953 = vxor.u32 %v952, 2147483648
        %v954 = vmul.f32 %v953, 1.442695
        %v955 = vpow.pop %v954
        %v956 = vadd.f32 %v955, 1.0
        %v957 = vrcp.pop %v956
        %v958 = vmul.f32 %v956, %v957
        %v959 = vsub.f32 1.0, %v958
        %v960 = vmul.f32 %v957, %v959
        %v961 = vadd.f32 %v957, %v960
        %vm962 = vweird.f32 %v956
        %vm963 = vweird.f32 %v957
        %vm964 = vmor %vm962, %vm963
        %v965 = vsel %vm964, %v957, %v961
        %v966 = vand.u32 2147483647, %v956
        %vm967 = vcmp.eq.f32.partialorder %v966, 8.507059e+37
        %v968 = vand.u32 %v956, 2147483648
        %v969 = vor.u32 1.1754944e-38, %v968
        %v970 = vsel %vm967, %v969, %v965
        %v971 = vmul.f32 1.0, %v970
        %v972 = vld [vmem:[#allocation8] sm:$0xff]
        %v973 = vld [vmem:[#allocation8 + $0x8] sm:$0xff]
        %v974 = vld [vmem:[#allocation8 + $0x10] sm:$0xff]
        %v975 = vld [vmem:[#allocation8 + $0x18] sm:$0xff]
        %v976 = vld [vmem:[#allocation8 + $0x20] sm:$0xff]
        %v977 = vld [vmem:[#allocation8 + $0x28] sm:$0xff]
        %v978 = vld [vmem:[#allocation8 + $0x30] sm:$0xff]
        %v979 = vld [vmem:[#allocation8 + $0x38] sm:$0xff]
        %v980 = vld [vmem:[#allocation8 + $0x40] sm:$0xff]
        %v981 = vld [vmem:[#allocation8 + $0x48] sm:$0xff]
        %v982 = vld [vmem:[#allocation8 + $0x50] sm:$0xff]
        %v983 = vld [vmem:[#allocation8 + $0x58] sm:$0xff]
        %v984 = vld [vmem:[#allocation8 + $0x60] sm:$0xff]
        %v985 = vld [vmem:[#allocation8 + $0x68] sm:$0xff]
        %v986 = vld [vmem:[#allocation8 + $0x70] sm:$0xff]
        %v987 = vld [vmem:[#allocation8 + $0x78] sm:$0xff]
        %v988 = vld [vmem:[#allocation8 + $0x80] sm:$0xff]
        %v989 = vld [vmem:[#allocation8 + $0x88] sm:$0xff]
        %v990 = vld [vmem:[#allocation8 + $0x90] sm:$0xff]
        %v991 = vld [vmem:[#allocation8 + $0x98] sm:$0xff]
        %v992 = vld [vmem:[#allocation8 + $0xa0] sm:$0xff]
        %v993 = vld [vmem:[#allocation8 + $0xa8] sm:$0xff]
        %v994 = vld [vmem:[#allocation8 + $0xb0] sm:$0xff]
        %v995 = vld [vmem:[#allocation8 + $0xb8] sm:$0xff]
        %v996 = vld [vmem:[#allocation8 + $0xc0] sm:$0xff]
        %v997 = vld [vmem:[#allocation8 + $0xc8] sm:$0xff]
        %v998 = vld [vmem:[#allocation8 + $0xd0] sm:$0xff]
        %v999 = vld [vmem:[#allocation8 + $0xd8] sm:$0xff]
        %v1000 = vld [vmem:[#allocation8 + $0xe0] sm:$0xff]
        %v1001 = vld [vmem:[#allocation8 + $0xe8] sm:$0xff]
        %v1002 = vld [vmem:[#allocation8 + $0xf0] sm:$0xff]
        %v1003 = vld [vmem:[#allocation8 + $0xf8] sm:$0xff]
        %v1004 = vld [vmem:[#allocation8 + $0x100] sm:$0xff]
        %v1005 = vld [vmem:[#allocation8 + $0x108] sm:$0xff]
        %v1006 = vld [vmem:[#allocation8 + $0x110] sm:$0xff]
        %v1007 = vld [vmem:[#allocation8 + $0x118] sm:$0xff]
        %v1008 = vld [vmem:[#allocation8 + $0x120] sm:$0xff]
        %v1009 = vld [vmem:[#allocation8 + $0x128] sm:$0xff]
        %v1010 = vld [vmem:[#allocation8 + $0x130] sm:$0xff]
        %v1011 = vld [vmem:[#allocation8 + $0x138] sm:$0xff]
        %v1012 = vld [vmem:[#allocation8 + $0x140] sm:$0xff]
        %v1013 = vld [vmem:[#allocation8 + $0x148] sm:$0xff]
        %v1014 = vld [vmem:[#allocation8 + $0x150] sm:$0xff]
        %v1015 = vld [vmem:[#allocation8 + $0x158] sm:$0xff]
        %v1016 = vld [vmem:[#allocation8 + $0x160] sm:$0xff]
        %v1017 = vld [vmem:[#allocation8 + $0x168] sm:$0xff]
        %v1018 = vld [vmem:[#allocation8 + $0x170] sm:$0xff]
        %v1019 = vld [vmem:[#allocation8 + $0x178] sm:$0xff]
        %v1020 = vld [vmem:[#allocation8 + $0x180] sm:$0xff]
        %v1021 = vld [vmem:[#allocation8 + $0x188] sm:$0xff]
        %v1022 = vld [vmem:[#allocation8 + $0x190] sm:$0xff]
        %v1023 = vld [vmem:[#allocation8 + $0x198] sm:$0xff]
        %v1024 = vld [vmem:[#allocation8 + $0x1a0] sm:$0xff]
        %v1025 = vld [vmem:[#allocation8 + $0x1a8] sm:$0xff]
        %v1026 = vld [vmem:[#allocation8 + $0x1b0] sm:$0xff]
        %v1027 = vld [vmem:[#allocation8 + $0x1b8] sm:$0xff]
        %v1028 = vld [vmem:[#allocation8 + $0x1c0] sm:$0xff]
        %v1029 = vld [vmem:[#allocation8 + $0x1c8] sm:$0xff]
        %v1030 = vld [vmem:[#allocation8 + $0x1d0] sm:$0xff]
        %v1031 = vld [vmem:[#allocation8 + $0x1d8] sm:$0xff]
        %v1032 = vld [vmem:[#allocation8 + $0x1e0] sm:$0xff]
        %v1033 = vld [vmem:[#allocation8 + $0x1e8] sm:$0xff]
        %v1034 = vld [vmem:[#allocation8 + $0x1f0] sm:$0xff]
        %v1035 = vld [vmem:[#allocation8 + $0x1f8] sm:$0xff]
        %v1036 = vld [vmem:[%s7] sm:$0x3]
        %vm1037 = vcmask 64512
        %v1039 = vsel %vm1037, %v971, 0
        %1041 = vmatpush.msra.mxu0 0.0
        %1042 = vmatpush.msra.mxu0 0.0
        %1043 = vmatpush.msra.mxu0 0.0
        %1044 = vmatpush.msra.mxu0 0.0
        %1045 = vmatpush.msra.mxu0 0.0
        %1046 = vmatpush.msra.mxu0 0.0
        %1047 = vmatpush.msra.mxu0 0.0
        %1048 = vmatpush.msra.mxu0 0.0
        %1049 = vmatpush.msra.mxu0 0.0
        %1050 = vmatpush.msra.mxu0 0.0
        %1051 = vmatpush.msra.mxu0 0.0
        %1052 = vmatpush.msra.mxu0 0.0
        %1053 = vmatpush.msra.mxu0 0.0
        %1054 = vmatpush.msra.mxu0 0.0
        %1055 = vmatpush.msra.mxu0 0.0
        %1056 = vmatpush.msra.mxu0 %v624
        %1057 = vmatmul.f32.gmra.mxu0 %v1039
        %v1058 = vpop.f32.mrf.mxu0
        %v1059 = vadd.f32 0.0, %v1058
        %1060 = vdwg.mxu0
        %1061 = vmatpush.msra.mxu0 0.0
        %1062 = vmatpush.msra.mxu0 0.0
        %1063 = vmatpush.msra.mxu0 0.0
        %1064 = vmatpush.msra.mxu0 0.0
        %1065 = vmatpush.msra.mxu0 0.0
        %1066 = vmatpush.msra.mxu0 0.0
        %1067 = vmatpush.msra.mxu0 0.0
        %1068 = vmatpush.msra.mxu0 0.0
        %1069 = vmatpush.msra.mxu0 0.0
        %1070 = vmatpush.msra.mxu0 0.0
        %1071 = vmatpush.msra.mxu0 0.0
        %1072 = vmatpush.msra.mxu0 0.0
        %1073 = vmatpush.msra.mxu0 0.0
        %1074 = vmatpush.msra.mxu0 0.0
        %1075 = vmatpush.msra.mxu0 0.0
        %1076 = vmatpush.msra.mxu0 %v625
        %1077 = vmatmul.f32.gmra.mxu0 %v1039
        %v1078 = vpop.f32.mrf.mxu0
        %v1079 = vadd.f32 0.0, %v1078
        %1080 = vdwg.mxu0
        %vm1081 = vcmp.gt.f32.partialorder %v1059, 0.0
        %vm1082 = vcmp.gt.f32.partialorder %v1079, 0.0
        %v1083 = vmul.f32 %v1059, 0.2
        %v1084 = vmul.f32 %v1079, 0.2
        %v1085 = vsel %vm1081, %v1059, %v1083
        %v1086 = vsel %vm1082, %v1079, %v1084
        %v1088 = vperm.slane %v1036, 0
        %v1089 = vperm.slane %v1036, 1
        %1092 = vmatpush.msra.mxu0 %v1002
        %1093 = vmatpush.msra.mxu0 %v1000
        %1094 = vmatpush.msra.mxu0 %v998
        %1095 = vmatpush.msra.mxu0 %v996
        %1096 = vmatpush.msra.mxu0 %v994
        %1097 = vmatpush.msra.mxu0 %v992
        %1098 = vmatpush.msra.mxu0 %v990
        %1099 = vmatpush.msra.mxu0 %v988
        %1100 = vmatpush.msra.mxu0 %v986
        %1101 = vmatpush.msra.mxu0 %v984
        %1102 = vmatpush.msra.mxu0 %v982
        %1103 = vmatpush.msra.mxu0 %v980
        %1104 = vmatpush.msra.mxu0 %v978
        %1105 = vmatpush.msra.mxu0 %v976
        %1106 = vmatpush.msra.mxu0 %v974
        %1107 = vmatpush.msra.mxu0 %v972
        %1108 = vmatmul.f32.gmra.mxu0 %v1085
        %v1109 = vpop.f32.mrf.mxu0
        %v1110 = vadd.f32 %v1088, %v1109
        %1111 = vdwg.mxu0
        %1112 = vmatpush.msra.mxu0 %v1034
        %1113 = vmatpush.msra.mxu0 %v1032
        %1114 = vmatpush.msra.mxu0 %v1030
        %1115 = vmatpush.msra.mxu0 %v1028
        %1116 = vmatpush.msra.mxu0 %v1026
        %1117 = vmatpush.msra.mxu0 %v1024
        %1118 = vmatpush.msra.mxu0 %v1022
        %1119 = vmatpush.msra.mxu0 %v1020
        %1120 = vmatpush.msra.mxu0 %v1018
        %1121 = vmatpush.msra.mxu0 %v1016
        %1122 = vmatpush.msra.mxu0 %v1014
        %1123 = vmatpush.msra.mxu0 %v1012
        %1124 = vmatpush.msra.mxu0 %v1010
        %1125 = vmatpush.msra.mxu0 %v1008
        %1126 = vmatpush.msra.mxu0 %v1006
        %1127 = vmatpush.msra.mxu0 %v1004
        %1128 = vmatmul.f32.gmra.mxu0 %v1086
        %v1129 = vpop.f32.mrf.mxu0
        %v1130 = vadd.f32 %v1110, %v1129
        %1131 = vdwg.mxu0
        %1132 = vmatpush.msra.mxu0 %v1003
        %1133 = vmatpush.msra.mxu0 %v1001
        %1134 = vmatpush.msra.mxu0 %v999
        %1135 = vmatpush.msra.mxu0 %v997
        %1136 = vmatpush.msra.mxu0 %v995
        %1137 = vmatpush.msra.mxu0 %v993
        %1138 = vmatpush.msra.mxu0 %v991
        %1139 = vmatpush.msra.mxu0 %v989
        %1140 = vmatpush.msra.mxu0 %v987
        %1141 = vmatpush.msra.mxu0 %v985
        %1142 = vmatpush.msra.mxu0 %v983
        %1143 = vmatpush.msra.mxu0 %v981
        %1144 = vmatpush.msra.mxu0 %v979
        %1145 = vmatpush.msra.mxu0 %v977
        %1146 = vmatpush.msra.mxu0 %v975
        %1147 = vmatpush.msra.mxu0 %v973
        %1148 = vmatmul.f32.gmra.mxu0 %v1085
        %v1149 = vpop.f32.mrf.mxu0
        %v1150 = vadd.f32 %v1089, %v1149
        %1151 = vdwg.mxu0
        %1152 = vmatpush.msra.mxu0 %v1035
        %1153 = vmatpush.msra.mxu0 %v1033
        %1154 = vmatpush.msra.mxu0 %v1031
        %1155 = vmatpush.msra.mxu0 %v1029
        %1156 = vmatpush.msra.mxu0 %v1027
        %1157 = vmatpush.msra.mxu0 %v1025
        %1158 = vmatpush.msra.mxu0 %v1023
        %1159 = vmatpush.msra.mxu0 %v1021
        %1160 = vmatpush.msra.mxu0 %v1019
        %1161 = vmatpush.msra.mxu0 %v1017
        %1162 = vmatpush.msra.mxu0 %v1015
        %1163 = vmatpush.msra.mxu0 %v1013
        %1164 = vmatpush.msra.mxu0 %v1011
        %1165 = vmatpush.msra.mxu0 %v1009
        %1166 = vmatpush.msra.mxu0 %v1007
        %1167 = vmatpush.msra.mxu0 %v1005
        %1168 = vmatmul.f32.gmra.mxu0 %v1086
        %v1169 = vpop.f32.mrf.mxu0
        %v1170 = vadd.f32 %v1150, %v1169
        %1171 = vdwg.mxu0
        %vm1172 = vcmp.gt.f32.partialorder %v1130, 0.0
        %vm1173 = vcmp.gt.f32.partialorder %v1170, 0.0
        %v1174 = vmul.f32 %v1130, 0.2
        %v1175 = vmul.f32 %v1170, 0.2
        %v1176 = vsel %vm1172, %v1130, %v1174
        %v1177 = vsel %vm1173, %v1170, %v1175
        %v1178 = vadd.f32 %v1176, %v624
        %v1179 = vadd.f32 %v1177, %v625
        %1180 = vmatpush.msra.mxu0 0.0
        %1181 = vmatpush.msra.mxu0 0.0
        %1182 = vmatpush.msra.mxu0 0.0
        %1183 = vmatpush.msra.mxu0 0.0
        %1184 = vmatpush.msra.mxu0 0.0
        %1185 = vmatpush.msra.mxu0 0.0
        %1186 = vmatpush.msra.mxu0 0.0
        %1187 = vmatpush.msra.mxu0 0.0
        %1188 = vmatpush.msra.mxu0 0.0
        %1189 = vmatpush.msra.mxu0 0.0
        %1190 = vmatpush.msra.mxu0 0.0
        %1191 = vmatpush.msra.mxu0 0.0
        %1192 = vmatpush.msra.mxu0 0.0
        %1193 = vmatpush.msra.mxu0 0.0
        %1194 = vmatpush.msra.mxu0 0.0
        %1195 = vmatpush.msra.mxu0 %v1178
        %1196 = vmatmul.f32.gmra.mxu0 %v1039
        %v1197 = vpop.f32.mrf.mxu0
        %v1198 = vadd.f32 0.0, %v1197
        %1199 = vdwg.mxu0
        %1200 = vmatpush.msra.mxu0 0.0
        %1201 = vmatpush.msra.mxu0 0.0
        %1202 = vmatpush.msra.mxu0 0.0
        %1203 = vmatpush.msra.mxu0 0.0
        %1204 = vmatpush.msra.mxu0 0.0
        %1205 = vmatpush.msra.mxu0 0.0
        %1206 = vmatpush.msra.mxu0 0.0
        %1207 = vmatpush.msra.mxu0 0.0
        %1208 = vmatpush.msra.mxu0 0.0
        %1209 = vmatpush.msra.mxu0 0.0
        %1210 = vmatpush.msra.mxu0 0.0
        %1211 = vmatpush.msra.mxu0 0.0
        %1212 = vmatpush.msra.mxu0 0.0
        %1213 = vmatpush.msra.mxu0 0.0
        %1214 = vmatpush.msra.mxu0 0.0
        %1215 = vmatpush.msra.mxu0 %v1179
        %1216 = vmatmul.f32.gmra.mxu0 %v1039
        %v1217 = vpop.f32.mrf.mxu0
        %v1218 = vadd.f32 0.0, %v1217
        %1219 = vdwg.mxu0
        %vm1220 = vcmp.gt.f32.partialorder %v1198, 0.0
        %vm1221 = vcmp.gt.f32.partialorder %v1218, 0.0
        %v1222 = vmul.f32 %v1198, 0.2
        %v1223 = vmul.f32 %v1218, 0.2
        %v1224 = vsel %vm1220, %v1198, %v1222
        %v1225 = vsel %vm1221, %v1218, %v1223
        %1226 = vmatpush.msra.mxu0 %v1002
        %1227 = vmatpush.msra.mxu0 %v1000
        %1228 = vmatpush.msra.mxu0 %v998
        %1229 = vmatpush.msra.mxu0 %v996
        %1230 = vmatpush.msra.mxu0 %v994
        %1231 = vmatpush.msra.mxu0 %v992
        %1232 = vmatpush.msra.mxu0 %v990
        %1233 = vmatpush.msra.mxu0 %v988
        %1234 = vmatpush.msra.mxu0 %v986
        %1235 = vmatpush.msra.mxu0 %v984
        %1236 = vmatpush.msra.mxu0 %v982
        %1237 = vmatpush.msra.mxu0 %v980
        %1238 = vmatpush.msra.mxu0 %v978
        %1239 = vmatpush.msra.mxu0 %v976
        %1240 = vmatpush.msra.mxu0 %v974
        %1241 = vmatpush.msra.mxu0 %v972
        %1242 = vmatmul.f32.gmra.mxu0 %v1224
        %v1243 = vpop.f32.mrf.mxu0
        %v1244 = vadd.f32 %v1088, %v1243
        %1245 = vdwg.mxu0
        %1246 = vmatpush.msra.mxu0 %v1034
        %1247 = vmatpush.msra.mxu0 %v1032
        %1248 = vmatpush.msra.mxu0 %v1030
        %1249 = vmatpush.msra.mxu0 %v1028
        %1250 = vmatpush.msra.mxu0 %v1026
        %1251 = vmatpush.msra.mxu0 %v1024
        %1252 = vmatpush.msra.mxu0 %v1022
        %1253 = vmatpush.msra.mxu0 %v1020
        %1254 = vmatpush.msra.mxu0 %v1018
        %1255 = vmatpush.msra.mxu0 %v1016
        %1256 = vmatpush.msra.mxu0 %v1014
        %1257 = vmatpush.msra.mxu0 %v1012
        %1258 = vmatpush.msra.mxu0 %v1010
        %1259 = vmatpush.msra.mxu0 %v1008
        %1260 = vmatpush.msra.mxu0 %v1006
        %1261 = vmatpush.msra.mxu0 %v1004
        %1262 = vmatmul.f32.gmra.mxu0 %v1225
        %v1263 = vpop.f32.mrf.mxu0
        %v1264 = vadd.f32 %v1244, %v1263
        %1265 = vdwg.mxu0
        %1266 = vmatpush.msra.mxu0 %v1003
        %1267 = vmatpush.msra.mxu0 %v1001
        %1268 = vmatpush.msra.mxu0 %v999
        %1269 = vmatpush.msra.mxu0 %v997
        %1270 = vmatpush.msra.mxu0 %v995
        %1271 = vmatpush.msra.mxu0 %v993
        %1272 = vmatpush.msra.mxu0 %v991
        %1273 = vmatpush.msra.mxu0 %v989
        %1274 = vmatpush.msra.mxu0 %v987
        %1275 = vmatpush.msra.mxu0 %v985
        %1276 = vmatpush.msra.mxu0 %v983
        %1277 = vmatpush.msra.mxu0 %v981
        %1278 = vmatpush.msra.mxu0 %v979
        %1279 = vmatpush.msra.mxu0 %v977
        %1280 = vmatpush.msra.mxu0 %v975
        %1281 = vmatpush.msra.mxu0 %v973
        %1282 = vmatmul.f32.gmra.mxu0 %v1224
        %v1283 = vpop.f32.mrf.mxu0
        %v1284 = vadd.f32 %v1089, %v1283
        %1285 = vdwg.mxu0
        %1286 = vmatpush.msra.mxu0 %v1035
        %1287 = vmatpush.msra.mxu0 %v1033
        %1288 = vmatpush.msra.mxu0 %v1031
        %1289 = vmatpush.msra.mxu0 %v1029
        %1290 = vmatpush.msra.mxu0 %v1027
        %1291 = vmatpush.msra.mxu0 %v1025
        %1292 = vmatpush.msra.mxu0 %v1023
        %1293 = vmatpush.msra.mxu0 %v1021
        %1294 = vmatpush.msra.mxu0 %v1019
        %1295 = vmatpush.msra.mxu0 %v1017
        %1296 = vmatpush.msra.mxu0 %v1015
        %1297 = vmatpush.msra.mxu0 %v1013
        %1298 = vmatpush.msra.mxu0 %v1011
        %1299 = vmatpush.msra.mxu0 %v1009
        %1300 = vmatpush.msra.mxu0 %v1007
        %1301 = vmatpush.msra.mxu0 %v1005
        %1302 = vmatmul.f32.gmra.mxu0 %v1225
        %v1303 = vpop.f32.mrf.mxu0
        %v1304 = vadd.f32 %v1284, %v1303
        %1305 = vdwg.mxu0
        %vm1306 = vcmp.gt.f32.partialorder %v1264, 0.0
        %vm1307 = vcmp.gt.f32.partialorder %v1304, 0.0
        %v1308 = vmul.f32 %v1264, 0.2
        %v1309 = vmul.f32 %v1304, 0.2
        %v1310 = vsel %vm1306, %v1264, %v1308
        %v1311 = vsel %vm1307, %v1304, %v1309
        %v1312 = vadd.f32 %v1310, %v624
        %v1313 = vadd.f32 %v1311, %v625
        %1314 = vmatpush.msra.mxu0 0.0
        %1315 = vmatpush.msra.mxu0 0.0
        %1316 = vmatpush.msra.mxu0 0.0
        %1317 = vmatpush.msra.mxu0 0.0
        %1318 = vmatpush.msra.mxu0 0.0
        %1319 = vmatpush.msra.mxu0 0.0
        %1320 = vmatpush.msra.mxu0 0.0
        %1321 = vmatpush.msra.mxu0 0.0
        %1322 = vmatpush.msra.mxu0 0.0
        %1323 = vmatpush.msra.mxu0 0.0
        %1324 = vmatpush.msra.mxu0 0.0
        %1325 = vmatpush.msra.mxu0 0.0
        %1326 = vmatpush.msra.mxu0 0.0
        %1327 = vmatpush.msra.mxu0 0.0
        %1328 = vmatpush.msra.mxu0 0.0
        %1329 = vmatpush.msra.mxu0 %v1312
        %1330 = vmatmul.f32.gmra.mxu0 %v1039
        %v1331 = vpop.f32.mrf.mxu0
        %v1332 = vadd.f32 0.0, %v1331
        %1333 = vdwg.mxu0
        %1334 = vmatpush.msra.mxu0 0.0
        %1335 = vmatpush.msra.mxu0 0.0
        %1336 = vmatpush.msra.mxu0 0.0
        %1337 = vmatpush.msra.mxu0 0.0
        %1338 = vmatpush.msra.mxu0 0.0
        %1339 = vmatpush.msra.mxu0 0.0
        %1340 = vmatpush.msra.mxu0 0.0
        %1341 = vmatpush.msra.mxu0 0.0
        %1342 = vmatpush.msra.mxu0 0.0
        %1343 = vmatpush.msra.mxu0 0.0
        %1344 = vmatpush.msra.mxu0 0.0
        %1345 = vmatpush.msra.mxu0 0.0
        %1346 = vmatpush.msra.mxu0 0.0
        %1347 = vmatpush.msra.mxu0 0.0
        %1348 = vmatpush.msra.mxu0 0.0
        %1349 = vmatpush.msra.mxu0 %v1313
        %1350 = vmatmul.f32.gmra.mxu0 %v1039
        %v1351 = vpop.f32.mrf.mxu0
        %v1352 = vadd.f32 0.0, %v1351
        %1353 = vdwg.mxu0
        %vm1354 = vcmp.gt.f32.partialorder %v1332, 0.0
        %vm1355 = vcmp.gt.f32.partialorder %v1352, 0.0
        %v1356 = vmul.f32 %v1332, 0.2
        %v1357 = vmul.f32 %v1352, 0.2
        %v1358 = vsel %vm1354, %v1332, %v1356
        %v1359 = vsel %vm1355, %v1352, %v1357
        %1360 = vmatpush.msra.mxu0 %v1002
        %1361 = vmatpush.msra.mxu0 %v1000
        %1362 = vmatpush.msra.mxu0 %v998
        %1363 = vmatpush.msra.mxu0 %v996
        %1364 = vmatpush.msra.mxu0 %v994
        %1365 = vmatpush.msra.mxu0 %v992
        %1366 = vmatpush.msra.mxu0 %v990
        %1367 = vmatpush.msra.mxu0 %v988
        %1368 = vmatpush.msra.mxu0 %v986
        %1369 = vmatpush.msra.mxu0 %v984
        %1370 = vmatpush.msra.mxu0 %v982
        %1371 = vmatpush.msra.mxu0 %v980
        %1372 = vmatpush.msra.mxu0 %v978
        %1373 = vmatpush.msra.mxu0 %v976
        %1374 = vmatpush.msra.mxu0 %v974
        %1375 = vmatpush.msra.mxu0 %v972
        %1376 = vmatmul.f32.gmra.mxu0 %v1358
        %v1377 = vpop.f32.mrf.mxu0
        %v1378 = vadd.f32 %v1088, %v1377
        %1379 = vdwg.mxu0
        %1380 = vmatpush.msra.mxu0 %v1034
        %1381 = vmatpush.msra.mxu0 %v1032
        %1382 = vmatpush.msra.mxu0 %v1030
        %1383 = vmatpush.msra.mxu0 %v1028
        %1384 = vmatpush.msra.mxu0 %v1026
        %1385 = vmatpush.msra.mxu0 %v1024
        %1386 = vmatpush.msra.mxu0 %v1022
        %1387 = vmatpush.msra.mxu0 %v1020
        %1388 = vmatpush.msra.mxu0 %v1018
        %1389 = vmatpush.msra.mxu0 %v1016
        %1390 = vmatpush.msra.mxu0 %v1014
        %1391 = vmatpush.msra.mxu0 %v1012
        %1392 = vmatpush.msra.mxu0 %v1010
        %1393 = vmatpush.msra.mxu0 %v1008
        %1394 = vmatpush.msra.mxu0 %v1006
        %1395 = vmatpush.msra.mxu0 %v1004
        %1396 = vmatmul.f32.gmra.mxu0 %v1359
        %v1397 = vpop.f32.mrf.mxu0
        %v1398 = vadd.f32 %v1378, %v1397
        %1399 = vdwg.mxu0
        %1400 = vmatpush.msra.mxu0 %v1003
        %1401 = vmatpush.msra.mxu0 %v1001
        %1402 = vmatpush.msra.mxu0 %v999
        %1403 = vmatpush.msra.mxu0 %v997
        %1404 = vmatpush.msra.mxu0 %v995
        %1405 = vmatpush.msra.mxu0 %v993
        %1406 = vmatpush.msra.mxu0 %v991
        %1407 = vmatpush.msra.mxu0 %v989
        %1408 = vmatpush.msra.mxu0 %v987
        %1409 = vmatpush.msra.mxu0 %v985
        %1410 = vmatpush.msra.mxu0 %v983
        %1411 = vmatpush.msra.mxu0 %v981
        %1412 = vmatpush.msra.mxu0 %v979
        %1413 = vmatpush.msra.mxu0 %v977
        %1414 = vmatpush.msra.mxu0 %v975
        %1415 = vmatpush.msra.mxu0 %v973
        %1416 = vmatmul.f32.gmra.mxu0 %v1358
        %v1417 = vpop.f32.mrf.mxu0
        %v1418 = vadd.f32 %v1089, %v1417
        %1419 = vdwg.mxu0
        %1420 = vmatpush.msra.mxu0 %v1035
        %1421 = vmatpush.msra.mxu0 %v1033
        %1422 = vmatpush.msra.mxu0 %v1031
        %1423 = vmatpush.msra.mxu0 %v1029
        %1424 = vmatpush.msra.mxu0 %v1027
        %1425 = vmatpush.msra.mxu0 %v1025
        %1426 = vmatpush.msra.mxu0 %v1023
        %1427 = vmatpush.msra.mxu0 %v1021
        %1428 = vmatpush.msra.mxu0 %v1019
        %1429 = vmatpush.msra.mxu0 %v1017
        %1430 = vmatpush.msra.mxu0 %v1015
        %1431 = vmatpush.msra.mxu0 %v1013
        %1432 = vmatpush.msra.mxu0 %v1011
        %1433 = vmatpush.msra.mxu0 %v1009
        %1434 = vmatpush.msra.mxu0 %v1007
        %1435 = vmatpush.msra.mxu0 %v1005
        %1436 = vmatmul.f32.gmra.mxu0 %v1359
        %v1437 = vpop.f32.mrf.mxu0
        %v1438 = vadd.f32 %v1418, %v1437
        %1439 = vdwg.mxu0
        %vm1440 = vcmp.gt.f32.partialorder %v1398, 0.0
        %vm1441 = vcmp.gt.f32.partialorder %v1438, 0.0
        %v1442 = vmul.f32 %v1398, 0.2
        %v1443 = vmul.f32 %v1438, 0.2
        %v1444 = vsel %vm1440, %v1398, %v1442
        %v1445 = vsel %vm1441, %v1438, %v1443
        %v1446 = vld [vmem:[#allocation10] sm:$0xff]
        %v1447 = vld [vmem:[#allocation10 + $0x8] sm:$0xff]
        %v1448 = vld [vmem:[#allocation10 + $0x10] sm:$0xff]
        %v1449 = vld [vmem:[#allocation10 + $0x18] sm:$0xff]
        %v1450 = vld [vmem:[#allocation10 + $0x20] sm:$0xff]
        %v1451 = vld [vmem:[#allocation10 + $0x28] sm:$0xff]
        %v1452 = vld [vmem:[#allocation10 + $0x30] sm:$0xff]
        %v1453 = vld [vmem:[#allocation10 + $0x38] sm:$0xff]
        %v1454 = vld [vmem:[#allocation10 + $0x40] sm:$0xff]
        %v1455 = vld [vmem:[#allocation10 + $0x48] sm:$0xff]
        %v1456 = vld [vmem:[#allocation10 + $0x50] sm:$0xff]
        %v1457 = vld [vmem:[#allocation10 + $0x58] sm:$0xff]
        %v1458 = vld [vmem:[#allocation10 + $0x60] sm:$0xff]
        %v1459 = vld [vmem:[#allocation10 + $0x68] sm:$0xff]
        %v1460 = vld [vmem:[#allocation10 + $0x70] sm:$0xff]
        %v1461 = vld [vmem:[#allocation10 + $0x78] sm:$0xff]
        %v1462 = vld [vmem:[#allocation10 + $0x80] sm:$0xff]
        %v1463 = vld [vmem:[#allocation10 + $0x88] sm:$0xff]
        %v1464 = vld [vmem:[#allocation10 + $0x90] sm:$0xff]
        %v1465 = vld [vmem:[#allocation10 + $0x98] sm:$0xff]
        %v1466 = vld [vmem:[#allocation10 + $0xa0] sm:$0xff]
        %v1467 = vld [vmem:[#allocation10 + $0xa8] sm:$0xff]
        %v1468 = vld [vmem:[#allocation10 + $0xb0] sm:$0xff]
        %v1469 = vld [vmem:[#allocation10 + $0xb8] sm:$0xff]
        %v1470 = vld [vmem:[#allocation10 + $0xc0] sm:$0xff]
        %v1471 = vld [vmem:[#allocation10 + $0xc8] sm:$0xff]
        %v1472 = vld [vmem:[#allocation10 + $0xd0] sm:$0xff]
        %v1473 = vld [vmem:[#allocation10 + $0xd8] sm:$0xff]
        %v1474 = vld [vmem:[#allocation10 + $0xe0] sm:$0xff]
        %v1475 = vld [vmem:[#allocation10 + $0xe8] sm:$0xff]
        %v1476 = vld [vmem:[#allocation10 + $0xf0] sm:$0xff]
        %v1477 = vld [vmem:[#allocation10 + $0xf8] sm:$0xff]
        %v1478 = vld [vmem:[#allocation10 + $0x100] sm:$0xff]
        %v1479 = vld [vmem:[#allocation10 + $0x108] sm:$0xff]
        %v1480 = vld [vmem:[#allocation10 + $0x110] sm:$0xff]
        %v1481 = vld [vmem:[#allocation10 + $0x118] sm:$0xff]
        %v1482 = vld [vmem:[#allocation10 + $0x120] sm:$0xff]
        %v1483 = vld [vmem:[#allocation10 + $0x128] sm:$0xff]
        %v1484 = vld [vmem:[#allocation10 + $0x130] sm:$0xff]
        %v1485 = vld [vmem:[#allocation10 + $0x138] sm:$0xff]
        %v1486 = vld [vmem:[#allocation10 + $0x140] sm:$0xff]
        %v1487 = vld [vmem:[#allocation10 + $0x148] sm:$0xff]
        %v1488 = vld [vmem:[#allocation10 + $0x150] sm:$0xff]
        %v1489 = vld [vmem:[#allocation10 + $0x158] sm:$0xff]
        %v1490 = vld [vmem:[#allocation10 + $0x160] sm:$0xff]
        %v1491 = vld [vmem:[#allocation10 + $0x168] sm:$0xff]
        %v1492 = vld [vmem:[#allocation10 + $0x170] sm:$0xff]
        %v1493 = vld [vmem:[#allocation10 + $0x178] sm:$0xff]
        %v1494 = vld [vmem:[#allocation10 + $0x180] sm:$0xff]
        %v1495 = vld [vmem:[#allocation10 + $0x188] sm:$0xff]
        %v1496 = vld [vmem:[#allocation10 + $0x190] sm:$0xff]
        %v1497 = vld [vmem:[#allocation10 + $0x198] sm:$0xff]
        %v1498 = vld [vmem:[#allocation10 + $0x1a0] sm:$0xff]
        %v1499 = vld [vmem:[#allocation10 + $0x1a8] sm:$0xff]
        %v1500 = vld [vmem:[#allocation10 + $0x1b0] sm:$0xff]
        %v1501 = vld [vmem:[#allocation10 + $0x1b8] sm:$0xff]
        %v1502 = vld [vmem:[#allocation10 + $0x1c0] sm:$0xff]
        %v1503 = vld [vmem:[#allocation10 + $0x1c8] sm:$0xff]
        %v1504 = vld [vmem:[#allocation10 + $0x1d0] sm:$0xff]
        %v1505 = vld [vmem:[#allocation10 + $0x1d8] sm:$0xff]
        %v1506 = vld [vmem:[#allocation10 + $0x1e0] sm:$0xff]
        %v1507 = vld [vmem:[#allocation10 + $0x1e8] sm:$0xff]
        %v1508 = vld [vmem:[#allocation10 + $0x1f0] sm:$0xff]
        %v1509 = vld [vmem:[#allocation10 + $0x1f8] sm:$0xff]
        %v1510 = vld [vmem:[#allocation11] sm:$0xff]
        %v1511 = vld [vmem:[#allocation11 + $0x8] sm:$0xff]
        %v1512 = vld [vmem:[#allocation11 + $0x10] sm:$0xff]
        %v1513 = vld [vmem:[#allocation11 + $0x18] sm:$0xff]
        %v1514 = vld [vmem:[#allocation11 + $0x20] sm:$0xff]
        %v1515 = vld [vmem:[#allocation11 + $0x28] sm:$0xff]
        %v1516 = vld [vmem:[#allocation11 + $0x30] sm:$0xff]
        %v1517 = vld [vmem:[#allocation11 + $0x38] sm:$0xff]
        %v1518 = vld [vmem:[#allocation11 + $0x40] sm:$0xff]
        %v1519 = vld [vmem:[#allocation11 + $0x48] sm:$0xff]
        %v1520 = vld [vmem:[#allocation11 + $0x50] sm:$0xff]
        %v1521 = vld [vmem:[#allocation11 + $0x58] sm:$0xff]
        %v1522 = vld [vmem:[#allocation11 + $0x60] sm:$0xff]
        %v1523 = vld [vmem:[#allocation11 + $0x68] sm:$0xff]
        %v1524 = vld [vmem:[#allocation11 + $0x70] sm:$0xff]
        %v1525 = vld [vmem:[#allocation11 + $0x78] sm:$0xff]
        %v1526 = vld [vmem:[#allocation11 + $0x80] sm:$0xff]
        %v1527 = vld [vmem:[#allocation11 + $0x88] sm:$0xff]
        %v1528 = vld [vmem:[#allocation11 + $0x90] sm:$0xff]
        %v1529 = vld [vmem:[#allocation11 + $0x98] sm:$0xff]
        %v1530 = vld [vmem:[#allocation11 + $0xa0] sm:$0xff]
        %v1531 = vld [vmem:[#allocation11 + $0xa8] sm:$0xff]
        %v1532 = vld [vmem:[#allocation11 + $0xb0] sm:$0xff]
        %v1533 = vld [vmem:[#allocation11 + $0xb8] sm:$0xff]
        %v1534 = vld [vmem:[#allocation11 + $0xc0] sm:$0xff]
        %v1535 = vld [vmem:[#allocation11 + $0xc8] sm:$0xff]
        %v1536 = vld [vmem:[#allocation11 + $0xd0] sm:$0xff]
        %v1537 = vld [vmem:[#allocation11 + $0xd8] sm:$0xff]
        %v1538 = vld [vmem:[#allocation11 + $0xe0] sm:$0xff]
        %v1539 = vld [vmem:[#allocation11 + $0xe8] sm:$0xff]
        %v1540 = vld [vmem:[#allocation11 + $0xf0] sm:$0xff]
        %v1541 = vld [vmem:[#allocation11 + $0xf8] sm:$0xff]
        %v1542 = vld [vmem:[#allocation11 + $0x100] sm:$0xff]
        %v1543 = vld [vmem:[#allocation11 + $0x108] sm:$0xff]
        %v1544 = vld [vmem:[#allocation11 + $0x110] sm:$0xff]
        %v1545 = vld [vmem:[#allocation11 + $0x118] sm:$0xff]
        %v1546 = vld [vmem:[#allocation11 + $0x120] sm:$0xff]
        %v1547 = vld [vmem:[#allocation11 + $0x128] sm:$0xff]
        %v1548 = vld [vmem:[#allocation11 + $0x130] sm:$0xff]
        %v1549 = vld [vmem:[#allocation11 + $0x138] sm:$0xff]
        %v1550 = vld [vmem:[#allocation11 + $0x140] sm:$0xff]
        %v1551 = vld [vmem:[#allocation11 + $0x148] sm:$0xff]
        %v1552 = vld [vmem:[#allocation11 + $0x150] sm:$0xff]
        %v1553 = vld [vmem:[#allocation11 + $0x158] sm:$0xff]
        %v1554 = vld [vmem:[#allocation11 + $0x160] sm:$0xff]
        %v1555 = vld [vmem:[#allocation11 + $0x168] sm:$0xff]
        %v1556 = vld [vmem:[#allocation11 + $0x170] sm:$0xff]
        %v1557 = vld [vmem:[#allocation11 + $0x178] sm:$0xff]
        %v1558 = vld [vmem:[#allocation11 + $0x180] sm:$0xff]
        %v1559 = vld [vmem:[#allocation11 + $0x188] sm:$0xff]
        %v1560 = vld [vmem:[#allocation11 + $0x190] sm:$0xff]
        %v1561 = vld [vmem:[#allocation11 + $0x198] sm:$0xff]
        %v1562 = vld [vmem:[#allocation11 + $0x1a0] sm:$0xff]
        %v1563 = vld [vmem:[#allocation11 + $0x1a8] sm:$0xff]
        %v1564 = vld [vmem:[#allocation11 + $0x1b0] sm:$0xff]
        %v1565 = vld [vmem:[#allocation11 + $0x1b8] sm:$0xff]
        %v1566 = vld [vmem:[#allocation11 + $0x1c0] sm:$0xff]
        %v1567 = vld [vmem:[#allocation11 + $0x1c8] sm:$0xff]
        %v1568 = vld [vmem:[#allocation11 + $0x1d0] sm:$0xff]
        %v1569 = vld [vmem:[#allocation11 + $0x1d8] sm:$0xff]
        %v1570 = vld [vmem:[#allocation11 + $0x1e0] sm:$0xff]
        %v1571 = vld [vmem:[#allocation11 + $0x1e8] sm:$0xff]
        %v1572 = vld [vmem:[#allocation11 + $0x1f0] sm:$0xff]
        %v1573 = vld [vmem:[#allocation11 + $0x1f8] sm:$0xff]
        %1574 = vmatpush.msra.mxu0 %v1540
        %1575 = vmatpush.msra.mxu0 %v1538
        %1576 = vmatpush.msra.mxu0 %v1536
        %1577 = vmatpush.msra.mxu0 %v1534
        %1578 = vmatpush.msra.mxu0 %v1532
        %1579 = vmatpush.msra.mxu0 %v1530
        %1580 = vmatpush.msra.mxu0 %v1528
        %1581 = vmatpush.msra.mxu0 %v1526
        %1582 = vmatpush.msra.mxu0 %v1524
        %1583 = vmatpush.msra.mxu0 %v1522
        %1584 = vmatpush.msra.mxu0 %v1520
        %1585 = vmatpush.msra.mxu0 %v1518
        %1586 = vmatpush.msra.mxu0 %v1516
        %1587 = vmatpush.msra.mxu0 %v1514
        %1588 = vmatpush.msra.mxu0 %v1512
        %1589 = vmatpush.msra.mxu0 %v1510
        %1590 = vmatmul.f32.gmra.mxu0 %v1176
        %v1591 = vpop.f32.mrf.mxu0
        %v1592 = vadd.f32 0.0, %v1591
        %1593 = vdwg.mxu0
        %1594 = vmatpush.msra.mxu0 %v1572
        %1595 = vmatpush.msra.mxu0 %v1570
        %1596 = vmatpush.msra.mxu0 %v1568
        %1597 = vmatpush.msra.mxu0 %v1566
        %1598 = vmatpush.msra.mxu0 %v1564
        %1599 = vmatpush.msra.mxu0 %v1562
        %1600 = vmatpush.msra.mxu0 %v1560
        %1601 = vmatpush.msra.mxu0 %v1558
        %1602 = vmatpush.msra.mxu0 %v1556
        %1603 = vmatpush.msra.mxu0 %v1554
        %1604 = vmatpush.msra.mxu0 %v1552
        %1605 = vmatpush.msra.mxu0 %v1550
        %1606 = vmatpush.msra.mxu0 %v1548
        %1607 = vmatpush.msra.mxu0 %v1546
        %1608 = vmatpush.msra.mxu0 %v1544
        %1609 = vmatpush.msra.mxu0 %v1542
        %1610 = vmatmul.f32.gmra.mxu0 %v1177
        %v1611 = vpop.f32.mrf.mxu0
        %v1612 = vadd.f32 %v1592, %v1611
        %1613 = vdwg.mxu0
        %1614 = vmatpush.msra.mxu0 %v1541
        %1615 = vmatpush.msra.mxu0 %v1539
        %1616 = vmatpush.msra.mxu0 %v1537
        %1617 = vmatpush.msra.mxu0 %v1535
        %1618 = vmatpush.msra.mxu0 %v1533
        %1619 = vmatpush.msra.mxu0 %v1531
        %1620 = vmatpush.msra.mxu0 %v1529
        %1621 = vmatpush.msra.mxu0 %v1527
        %1622 = vmatpush.msra.mxu0 %v1525
        %1623 = vmatpush.msra.mxu0 %v1523
        %1624 = vmatpush.msra.mxu0 %v1521
        %1625 = vmatpush.msra.mxu0 %v1519
        %1626 = vmatpush.msra.mxu0 %v1517
        %1627 = vmatpush.msra.mxu0 %v1515
        %1628 = vmatpush.msra.mxu0 %v1513
        %1629 = vmatpush.msra.mxu0 %v1511
        %1630 = vmatmul.f32.gmra.mxu0 %v1176
        %v1631 = vpop.f32.mrf.mxu0
        %v1632 = vadd.f32 0.0, %v1631
        %1633 = vdwg.mxu0
        %1634 = vmatpush.msra.mxu0 %v1573
        %1635 = vmatpush.msra.mxu0 %v1571
        %1636 = vmatpush.msra.mxu0 %v1569
        %1637 = vmatpush.msra.mxu0 %v1567
        %1638 = vmatpush.msra.mxu0 %v1565
        %1639 = vmatpush.msra.mxu0 %v1563
        %1640 = vmatpush.msra.mxu0 %v1561
        %1641 = vmatpush.msra.mxu0 %v1559
        %1642 = vmatpush.msra.mxu0 %v1557
        %1643 = vmatpush.msra.mxu0 %v1555
        %1644 = vmatpush.msra.mxu0 %v1553
        %1645 = vmatpush.msra.mxu0 %v1551
        %1646 = vmatpush.msra.mxu0 %v1549
        %1647 = vmatpush.msra.mxu0 %v1547
        %1648 = vmatpush.msra.mxu0 %v1545
        %1649 = vmatpush.msra.mxu0 %v1543
        %1650 = vmatmul.f32.gmra.mxu0 %v1177
        %v1651 = vpop.f32.mrf.mxu0
        %v1652 = vadd.f32 %v1632, %v1651
        %1653 = vdwg.mxu0
        %1654 = vmatpush.msra.mxu0 %v1476
        %1655 = vmatpush.msra.mxu0 %v1474
        %1656 = vmatpush.msra.mxu0 %v1472
        %1657 = vmatpush.msra.mxu0 %v1470
        %1658 = vmatpush.msra.mxu0 %v1468
        %1659 = vmatpush.msra.mxu0 %v1466
        %1660 = vmatpush.msra.mxu0 %v1464
        %1661 = vmatpush.msra.mxu0 %v1462
        %1662 = vmatpush.msra.mxu0 %v1460
        %1663 = vmatpush.msra.mxu0 %v1458
        %1664 = vmatpush.msra.mxu0 %v1456
        %1665 = vmatpush.msra.mxu0 %v1454
        %1666 = vmatpush.msra.mxu0 %v1452
        %1667 = vmatpush.msra.mxu0 %v1450
        %1668 = vmatpush.msra.mxu0 %v1448
        %1669 = vmatpush.msra.mxu0 %v1446
        %1670 = vmatmul.f32.gmra.mxu0 %v624
        %v1671 = vpop.f32.mrf.mxu0
        %v1672 = vadd.f32 %v1612, %v1671
        %1673 = vdwg.mxu0
        %1674 = vmatpush.msra.mxu0 %v1508
        %1675 = vmatpush.msra.mxu0 %v1506
        %1676 = vmatpush.msra.mxu0 %v1504
        %1677 = vmatpush.msra.mxu0 %v1502
        %1678 = vmatpush.msra.mxu0 %v1500
        %1679 = vmatpush.msra.mxu0 %v1498
        %1680 = vmatpush.msra.mxu0 %v1496
        %1681 = vmatpush.msra.mxu0 %v1494
        %1682 = vmatpush.msra.mxu0 %v1492
        %1683 = vmatpush.msra.mxu0 %v1490
        %1684 = vmatpush.msra.mxu0 %v1488
        %1685 = vmatpush.msra.mxu0 %v1486
        %1686 = vmatpush.msra.mxu0 %v1484
        %1687 = vmatpush.msra.mxu0 %v1482
        %1688 = vmatpush.msra.mxu0 %v1480
        %1689 = vmatpush.msra.mxu0 %v1478
        %1690 = vmatmul.f32.gmra.mxu0 %v625
        %v1691 = vpop.f32.mrf.mxu0
        %v1692 = vadd.f32 %v1672, %v1691
        %1693 = vdwg.mxu0
        %1694 = vmatpush.msra.mxu0 %v1477
        %1695 = vmatpush.msra.mxu0 %v1475
        %1696 = vmatpush.msra.mxu0 %v1473
        %1697 = vmatpush.msra.mxu0 %v1471
        %1698 = vmatpush.msra.mxu0 %v1469
        %1699 = vmatpush.msra.mxu0 %v1467
        %1700 = vmatpush.msra.mxu0 %v1465
        %1701 = vmatpush.msra.mxu0 %v1463
        %1702 = vmatpush.msra.mxu0 %v1461
        %1703 = vmatpush.msra.mxu0 %v1459
        %1704 = vmatpush.msra.mxu0 %v1457
        %1705 = vmatpush.msra.mxu0 %v1455
        %1706 = vmatpush.msra.mxu0 %v1453
        %1707 = vmatpush.msra.mxu0 %v1451
        %1708 = vmatpush.msra.mxu0 %v1449
        %1709 = vmatpush.msra.mxu0 %v1447
        %1710 = vmatmul.f32.gmra.mxu0 %v624
        %v1711 = vpop.f32.mrf.mxu0
        %v1712 = vadd.f32 %v1652, %v1711
        %1713 = vdwg.mxu0
        %1714 = vmatpush.msra.mxu0 %v1509
        %1715 = vmatpush.msra.mxu0 %v1507
        %1716 = vmatpush.msra.mxu0 %v1505
        %1717 = vmatpush.msra.mxu0 %v1503
        %1718 = vmatpush.msra.mxu0 %v1501
        %1719 = vmatpush.msra.mxu0 %v1499
        %1720 = vmatpush.msra.mxu0 %v1497
        %1721 = vmatpush.msra.mxu0 %v1495
        %1722 = vmatpush.msra.mxu0 %v1493
        %1723 = vmatpush.msra.mxu0 %v1491
        %1724 = vmatpush.msra.mxu0 %v1489
        %1725 = vmatpush.msra.mxu0 %v1487
        %1726 = vmatpush.msra.mxu0 %v1485
        %1727 = vmatpush.msra.mxu0 %v1483
        %1728 = vmatpush.msra.mxu0 %v1481
        %1729 = vmatpush.msra.mxu0 %v1479
        %1730 = vmatmul.f32.gmra.mxu0 %v625
        %v1731 = vpop.f32.mrf.mxu0
        %v1732 = vadd.f32 %v1712, %v1731
        %1733 = vdwg.mxu0
        %v1734 = vld [vmem:[#allocation13] sm:$0xff]
        %v1735 = vld [vmem:[#allocation13 + $0x8] sm:$0xff]
        %v1736 = vld [vmem:[#allocation13 + $0x10] sm:$0xff]
        %v1737 = vld [vmem:[#allocation13 + $0x18] sm:$0xff]
        %v1738 = vld [vmem:[#allocation13 + $0x20] sm:$0xff]
        %v1739 = vld [vmem:[#allocation13 + $0x28] sm:$0xff]
        %v1740 = vld [vmem:[#allocation13 + $0x30] sm:$0xff]
        %v1741 = vld [vmem:[#allocation13 + $0x38] sm:$0xff]
        %v1742 = vld [vmem:[#allocation13 + $0x40] sm:$0xff]
        %v1743 = vld [vmem:[#allocation13 + $0x48] sm:$0xff]
        %v1744 = vld [vmem:[#allocation13 + $0x50] sm:$0xff]
        %v1745 = vld [vmem:[#allocation13 + $0x58] sm:$0xff]
        %v1746 = vld [vmem:[#allocation13 + $0x60] sm:$0xff]
        %v1747 = vld [vmem:[#allocation13 + $0x68] sm:$0xff]
        %v1748 = vld [vmem:[#allocation13 + $0x70] sm:$0xff]
        %v1749 = vld [vmem:[#allocation13 + $0x78] sm:$0xff]
        %v1750 = vld [vmem:[#allocation13 + $0x80] sm:$0xff]
        %v1751 = vld [vmem:[#allocation13 + $0x88] sm:$0xff]
        %v1752 = vld [vmem:[#allocation13 + $0x90] sm:$0xff]
        %v1753 = vld [vmem:[#allocation13 + $0x98] sm:$0xff]
        %v1754 = vld [vmem:[#allocation13 + $0xa0] sm:$0xff]
        %v1755 = vld [vmem:[#allocation13 + $0xa8] sm:$0xff]
        %v1756 = vld [vmem:[#allocation13 + $0xb0] sm:$0xff]
        %v1757 = vld [vmem:[#allocation13 + $0xb8] sm:$0xff]
        %v1758 = vld [vmem:[#allocation13 + $0xc0] sm:$0xff]
        %v1759 = vld [vmem:[#allocation13 + $0xc8] sm:$0xff]
        %v1760 = vld [vmem:[#allocation13 + $0xd0] sm:$0xff]
        %v1761 = vld [vmem:[#allocation13 + $0xd8] sm:$0xff]
        %v1762 = vld [vmem:[#allocation13 + $0xe0] sm:$0xff]
        %v1763 = vld [vmem:[#allocation13 + $0xe8] sm:$0xff]
        %v1764 = vld [vmem:[#allocation13 + $0xf0] sm:$0xff]
        %v1765 = vld [vmem:[#allocation13 + $0xf8] sm:$0xff]
        %v1766 = vld [vmem:[#allocation13 + $0x100] sm:$0xff]
        %v1767 = vld [vmem:[#allocation13 + $0x108] sm:$0xff]
        %v1768 = vld [vmem:[#allocation13 + $0x110] sm:$0xff]
        %v1769 = vld [vmem:[#allocation13 + $0x118] sm:$0xff]
        %v1770 = vld [vmem:[#allocation13 + $0x120] sm:$0xff]
        %v1771 = vld [vmem:[#allocation13 + $0x128] sm:$0xff]
        %v1772 = vld [vmem:[#allocation13 + $0x130] sm:$0xff]
        %v1773 = vld [vmem:[#allocation13 + $0x138] sm:$0xff]
        %v1774 = vld [vmem:[#allocation13 + $0x140] sm:$0xff]
        %v1775 = vld [vmem:[#allocation13 + $0x148] sm:$0xff]
        %v1776 = vld [vmem:[#allocation13 + $0x150] sm:$0xff]
        %v1777 = vld [vmem:[#allocation13 + $0x158] sm:$0xff]
        %v1778 = vld [vmem:[#allocation13 + $0x160] sm:$0xff]
        %v1779 = vld [vmem:[#allocation13 + $0x168] sm:$0xff]
        %v1780 = vld [vmem:[#allocation13 + $0x170] sm:$0xff]
        %v1781 = vld [vmem:[#allocation13 + $0x178] sm:$0xff]
        %v1782 = vld [vmem:[#allocation13 + $0x180] sm:$0xff]
        %v1783 = vld [vmem:[#allocation13 + $0x188] sm:$0xff]
        %v1784 = vld [vmem:[#allocation13 + $0x190] sm:$0xff]
        %v1785 = vld [vmem:[#allocation13 + $0x198] sm:$0xff]
        %v1786 = vld [vmem:[#allocation13 + $0x1a0] sm:$0xff]
        %v1787 = vld [vmem:[#allocation13 + $0x1a8] sm:$0xff]
        %v1788 = vld [vmem:[#allocation13 + $0x1b0] sm:$0xff]
        %v1789 = vld [vmem:[#allocation13 + $0x1b8] sm:$0xff]
        %v1790 = vld [vmem:[#allocation13 + $0x1c0] sm:$0xff]
        %v1791 = vld [vmem:[#allocation13 + $0x1c8] sm:$0xff]
        %v1792 = vld [vmem:[#allocation13 + $0x1d0] sm:$0xff]
        %v1793 = vld [vmem:[#allocation13 + $0x1d8] sm:$0xff]
        %v1794 = vld [vmem:[#allocation13 + $0x1e0] sm:$0xff]
        %v1795 = vld [vmem:[#allocation13 + $0x1e8] sm:$0xff]
        %v1796 = vld [vmem:[#allocation13 + $0x1f0] sm:$0xff]
        %v1797 = vld [vmem:[#allocation13 + $0x1f8] sm:$0xff]
        %1798 = vmatpush.msra.mxu0 %v1764
        %1799 = vmatpush.msra.mxu0 %v1762
        %1800 = vmatpush.msra.mxu0 %v1760
        %1801 = vmatpush.msra.mxu0 %v1758
        %1802 = vmatpush.msra.mxu0 %v1756
        %1803 = vmatpush.msra.mxu0 %v1754
        %1804 = vmatpush.msra.mxu0 %v1752
        %1805 = vmatpush.msra.mxu0 %v1750
        %1806 = vmatpush.msra.mxu0 %v1748
        %1807 = vmatpush.msra.mxu0 %v1746
        %1808 = vmatpush.msra.mxu0 %v1744
        %1809 = vmatpush.msra.mxu0 %v1742
        %1810 = vmatpush.msra.mxu0 %v1740
        %1811 = vmatpush.msra.mxu0 %v1738
        %1812 = vmatpush.msra.mxu0 %v1736
        %1813 = vmatpush.msra.mxu0 %v1734
        %1814 = vmatmul.f32.gmra.mxu0 %v1310
        %v1815 = vpop.f32.mrf.mxu0
        %v1816 = vadd.f32 0.0, %v1815
        %1817 = vdwg.mxu0
        %1818 = vmatpush.msra.mxu0 %v1796
        %1819 = vmatpush.msra.mxu0 %v1794
        %1820 = vmatpush.msra.mxu0 %v1792
        %1821 = vmatpush.msra.mxu0 %v1790
        %1822 = vmatpush.msra.mxu0 %v1788
        %1823 = vmatpush.msra.mxu0 %v1786
        %1824 = vmatpush.msra.mxu0 %v1784
        %1825 = vmatpush.msra.mxu0 %v1782
        %1826 = vmatpush.msra.mxu0 %v1780
        %1827 = vmatpush.msra.mxu0 %v1778
        %1828 = vmatpush.msra.mxu0 %v1776
        %1829 = vmatpush.msra.mxu0 %v1774
        %1830 = vmatpush.msra.mxu0 %v1772
        %1831 = vmatpush.msra.mxu0 %v1770
        %1832 = vmatpush.msra.mxu0 %v1768
        %1833 = vmatpush.msra.mxu0 %v1766
        %1834 = vmatmul.f32.gmra.mxu0 %v1311
        %v1835 = vpop.f32.mrf.mxu0
        %v1836 = vadd.f32 %v1816, %v1835
        %1837 = vdwg.mxu0
        %1838 = vmatpush.msra.mxu0 %v1765
        %1839 = vmatpush.msra.mxu0 %v1763
        %1840 = vmatpush.msra.mxu0 %v1761
        %1841 = vmatpush.msra.mxu0 %v1759
        %1842 = vmatpush.msra.mxu0 %v1757
        %1843 = vmatpush.msra.mxu0 %v1755
        %1844 = vmatpush.msra.mxu0 %v1753
        %1845 = vmatpush.msra.mxu0 %v1751
        %1846 = vmatpush.msra.mxu0 %v1749
        %1847 = vmatpush.msra.mxu0 %v1747
        %1848 = vmatpush.msra.mxu0 %v1745
        %1849 = vmatpush.msra.mxu0 %v1743
        %1850 = vmatpush.msra.mxu0 %v1741
        %1851 = vmatpush.msra.mxu0 %v1739
        %1852 = vmatpush.msra.mxu0 %v1737
        %1853 = vmatpush.msra.mxu0 %v1735
        %1854 = vmatmul.f32.gmra.mxu0 %v1310
        %v1855 = vpop.f32.mrf.mxu0
        %v1856 = vadd.f32 0.0, %v1855
        %1857 = vdwg.mxu0
        %1858 = vmatpush.msra.mxu0 %v1797
        %1859 = vmatpush.msra.mxu0 %v1795
        %1860 = vmatpush.msra.mxu0 %v1793
        %1861 = vmatpush.msra.mxu0 %v1791
        %1862 = vmatpush.msra.mxu0 %v1789
        %1863 = vmatpush.msra.mxu0 %v1787
        %1864 = vmatpush.msra.mxu0 %v1785
        %1865 = vmatpush.msra.mxu0 %v1783
        %1866 = vmatpush.msra.mxu0 %v1781
        %1867 = vmatpush.msra.mxu0 %v1779
        %1868 = vmatpush.msra.mxu0 %v1777
        %1869 = vmatpush.msra.mxu0 %v1775
        %1870 = vmatpush.msra.mxu0 %v1773
        %1871 = vmatpush.msra.mxu0 %v1771
        %1872 = vmatpush.msra.mxu0 %v1769
        %1873 = vmatpush.msra.mxu0 %v1767
        %1874 = vmatmul.f32.gmra.mxu0 %v1311
        %v1875 = vpop.f32.mrf.mxu0
        %v1876 = vadd.f32 %v1856, %v1875
        %1877 = vdwg.mxu0
        %v1878 = vadd.f32 %v1692, %v1836
        %v1879 = vadd.f32 %v1732, %v1876
        %v1880 = vld [vmem:[#allocation14] sm:$0xff]
        %v1881 = vld [vmem:[#allocation14 + $0x8] sm:$0xff]
        %v1882 = vld [vmem:[#allocation14 + $0x10] sm:$0xff]
        %v1883 = vld [vmem:[#allocation14 + $0x18] sm:$0xff]
        %v1884 = vld [vmem:[#allocation14 + $0x20] sm:$0xff]
        %v1885 = vld [vmem:[#allocation14 + $0x28] sm:$0xff]
        %v1886 = vld [vmem:[#allocation14 + $0x30] sm:$0xff]
        %v1887 = vld [vmem:[#allocation14 + $0x38] sm:$0xff]
        %v1888 = vld [vmem:[#allocation14 + $0x40] sm:$0xff]
        %v1889 = vld [vmem:[#allocation14 + $0x48] sm:$0xff]
        %v1890 = vld [vmem:[#allocation14 + $0x50] sm:$0xff]
        %v1891 = vld [vmem:[#allocation14 + $0x58] sm:$0xff]
        %v1892 = vld [vmem:[#allocation14 + $0x60] sm:$0xff]
        %v1893 = vld [vmem:[#allocation14 + $0x68] sm:$0xff]
        %v1894 = vld [vmem:[#allocation14 + $0x70] sm:$0xff]
        %v1895 = vld [vmem:[#allocation14 + $0x78] sm:$0xff]
        %v1896 = vld [vmem:[#allocation14 + $0x80] sm:$0xff]
        %v1897 = vld [vmem:[#allocation14 + $0x88] sm:$0xff]
        %v1898 = vld [vmem:[#allocation14 + $0x90] sm:$0xff]
        %v1899 = vld [vmem:[#allocation14 + $0x98] sm:$0xff]
        %v1900 = vld [vmem:[#allocation14 + $0xa0] sm:$0xff]
        %v1901 = vld [vmem:[#allocation14 + $0xa8] sm:$0xff]
        %v1902 = vld [vmem:[#allocation14 + $0xb0] sm:$0xff]
        %v1903 = vld [vmem:[#allocation14 + $0xb8] sm:$0xff]
        %v1904 = vld [vmem:[#allocation14 + $0xc0] sm:$0xff]
        %v1905 = vld [vmem:[#allocation14 + $0xc8] sm:$0xff]
        %v1906 = vld [vmem:[#allocation14 + $0xd0] sm:$0xff]
        %v1907 = vld [vmem:[#allocation14 + $0xd8] sm:$0xff]
        %v1908 = vld [vmem:[#allocation14 + $0xe0] sm:$0xff]
        %v1909 = vld [vmem:[#allocation14 + $0xe8] sm:$0xff]
        %v1910 = vld [vmem:[#allocation14 + $0xf0] sm:$0xff]
        %v1911 = vld [vmem:[#allocation14 + $0xf8] sm:$0xff]
        %v1912 = vld [vmem:[#allocation14 + $0x100] sm:$0xff]
        %v1913 = vld [vmem:[#allocation14 + $0x108] sm:$0xff]
        %v1914 = vld [vmem:[#allocation14 + $0x110] sm:$0xff]
        %v1915 = vld [vmem:[#allocation14 + $0x118] sm:$0xff]
        %v1916 = vld [vmem:[#allocation14 + $0x120] sm:$0xff]
        %v1917 = vld [vmem:[#allocation14 + $0x128] sm:$0xff]
        %v1918 = vld [vmem:[#allocation14 + $0x130] sm:$0xff]
        %v1919 = vld [vmem:[#allocation14 + $0x138] sm:$0xff]
        %v1920 = vld [vmem:[#allocation14 + $0x140] sm:$0xff]
        %v1921 = vld [vmem:[#allocation14 + $0x148] sm:$0xff]
        %v1922 = vld [vmem:[#allocation14 + $0x150] sm:$0xff]
        %v1923 = vld [vmem:[#allocation14 + $0x158] sm:$0xff]
        %v1924 = vld [vmem:[#allocation14 + $0x160] sm:$0xff]
        %v1925 = vld [vmem:[#allocation14 + $0x168] sm:$0xff]
        %v1926 = vld [vmem:[#allocation14 + $0x170] sm:$0xff]
        %v1927 = vld [vmem:[#allocation14 + $0x178] sm:$0xff]
        %v1928 = vld [vmem:[#allocation14 + $0x180] sm:$0xff]
        %v1929 = vld [vmem:[#allocation14 + $0x188] sm:$0xff]
        %v1930 = vld [vmem:[#allocation14 + $0x190] sm:$0xff]
        %v1931 = vld [vmem:[#allocation14 + $0x198] sm:$0xff]
        %v1932 = vld [vmem:[#allocation14 + $0x1a0] sm:$0xff]
        %v1933 = vld [vmem:[#allocation14 + $0x1a8] sm:$0xff]
        %v1934 = vld [vmem:[#allocation14 + $0x1b0] sm:$0xff]
        %v1935 = vld [vmem:[#allocation14 + $0x1b8] sm:$0xff]
        %v1936 = vld [vmem:[#allocation14 + $0x1c0] sm:$0xff]
        %v1937 = vld [vmem:[#allocation14 + $0x1c8] sm:$0xff]
        %v1938 = vld [vmem:[#allocation14 + $0x1d0] sm:$0xff]
        %v1939 = vld [vmem:[#allocation14 + $0x1d8] sm:$0xff]
        %v1940 = vld [vmem:[#allocation14 + $0x1e0] sm:$0xff]
        %v1941 = vld [vmem:[#allocation14 + $0x1e8] sm:$0xff]
        %v1942 = vld [vmem:[#allocation14 + $0x1f0] sm:$0xff]
        %v1943 = vld [vmem:[#allocation14 + $0x1f8] sm:$0xff]
        %1944 = vmatpush.msra.mxu0 %v1910
        %1945 = vmatpush.msra.mxu0 %v1908
        %1946 = vmatpush.msra.mxu0 %v1906
        %1947 = vmatpush.msra.mxu0 %v1904
        %1948 = vmatpush.msra.mxu0 %v1902
        %1949 = vmatpush.msra.mxu0 %v1900
        %1950 = vmatpush.msra.mxu0 %v1898
        %1951 = vmatpush.msra.mxu0 %v1896
        %1952 = vmatpush.msra.mxu0 %v1894
        %1953 = vmatpush.msra.mxu0 %v1892
        %1954 = vmatpush.msra.mxu0 %v1890
        %1955 = vmatpush.msra.mxu0 %v1888
        %1956 = vmatpush.msra.mxu0 %v1886
        %1957 = vmatpush.msra.mxu0 %v1884
        %1958 = vmatpush.msra.mxu0 %v1882
        %1959 = vmatpush.msra.mxu0 %v1880
        %1960 = vmatmul.f32.gmra.mxu0 %v1444
        %v1961 = vpop.f32.mrf.mxu0
        %v1962 = vadd.f32 0.0, %v1961
        %1963 = vdwg.mxu0
        %1964 = vmatpush.msra.mxu0 %v1942
        %1965 = vmatpush.msra.mxu0 %v1940
        %1966 = vmatpush.msra.mxu0 %v1938
        %1967 = vmatpush.msra.mxu0 %v1936
        %1968 = vmatpush.msra.mxu0 %v1934
        %1969 = vmatpush.msra.mxu0 %v1932
        %1970 = vmatpush.msra.mxu0 %v1930
        %1971 = vmatpush.msra.mxu0 %v1928
        %1972 = vmatpush.msra.mxu0 %v1926
        %1973 = vmatpush.msra.mxu0 %v1924
        %1974 = vmatpush.msra.mxu0 %v1922
        %1975 = vmatpush.msra.mxu0 %v1920
        %1976 = vmatpush.msra.mxu0 %v1918
        %1977 = vmatpush.msra.mxu0 %v1916
        %1978 = vmatpush.msra.mxu0 %v1914
        %1979 = vmatpush.msra.mxu0 %v1912
        %1980 = vmatmul.f32.gmra.mxu0 %v1445
        %v1981 = vpop.f32.mrf.mxu0
        %v1982 = vadd.f32 %v1962, %v1981
        %1983 = vdwg.mxu0
        %1984 = vmatpush.msra.mxu0 %v1911
        %1985 = vmatpush.msra.mxu0 %v1909
        %1986 = vmatpush.msra.mxu0 %v1907
        %1987 = vmatpush.msra.mxu0 %v1905
        %1988 = vmatpush.msra.mxu0 %v1903
        %1989 = vmatpush.msra.mxu0 %v1901
        %1990 = vmatpush.msra.mxu0 %v1899
        %1991 = vmatpush.msra.mxu0 %v1897
        %1992 = vmatpush.msra.mxu0 %v1895
        %1993 = vmatpush.msra.mxu0 %v1893
        %1994 = vmatpush.msra.mxu0 %v1891
        %1995 = vmatpush.msra.mxu0 %v1889
        %1996 = vmatpush.msra.mxu0 %v1887
        %1997 = vmatpush.msra.mxu0 %v1885
        %1998 = vmatpush.msra.mxu0 %v1883
        %1999 = vmatpush.msra.mxu0 %v1881
        %2000 = vmatmul.f32.gmra.mxu0 %v1444
        %v2001 = vpop.f32.mrf.mxu0
        %v2002 = vadd.f32 0.0, %v2001
        %2003 = vdwg.mxu0
        %2004 = vmatpush.msra.mxu0 %v1943
        %2005 = vmatpush.msra.mxu0 %v1941
        %2006 = vmatpush.msra.mxu0 %v1939
        %2007 = vmatpush.msra.mxu0 %v1937
        %2008 = vmatpush.msra.mxu0 %v1935
        %2009 = vmatpush.msra.mxu0 %v1933
        %2010 = vmatpush.msra.mxu0 %v1931
        %2011 = vmatpush.msra.mxu0 %v1929
        %2012 = vmatpush.msra.mxu0 %v1927
        %2013 = vmatpush.msra.mxu0 %v1925
        %2014 = vmatpush.msra.mxu0 %v1923
        %2015 = vmatpush.msra.mxu0 %v1921
        %2016 = vmatpush.msra.mxu0 %v1919
        %2017 = vmatpush.msra.mxu0 %v1917
        %2018 = vmatpush.msra.mxu0 %v1915
        %2019 = vmatpush.msra.mxu0 %v1913
        %2020 = vmatmul.f32.gmra.mxu0 %v1445
        %v2021 = vpop.f32.mrf.mxu0
        %v2022 = vadd.f32 %v2002, %v2021
        %2023 = vdwg.mxu0
        %v2024 = vadd.f32 %v1878, %v1982
        %v2025 = vadd.f32 %v1879, %v2022
        %v2026 = vld [vmem:[%s12] sm:$0x3]
        %v2028 = vperm.slane %v2026, 0
        %v2029 = vperm.slane %v2026, 1
        %v2032 = vadd.f32 %v2024, %v2028
        %v2033 = vadd.f32 %v2025, %v2029
        %vm2034 = vcmp.gt.f32.partialorder %v2032, 0.0
        %vm2035 = vcmp.gt.f32.partialorder %v2033, 0.0
        %v2036 = vmul.f32 %v2032, 0.2
        %v2037 = vmul.f32 %v2033, 0.2
        %v2038 = vsel %vm2034, %v2032, %v2036
        %v2039 = vsel %vm2035, %v2033, %v2037
        %v2040 = vld [vmem:[%s13] sm:$0xff]
        %v2041 = vld [vmem:[%s13 + $0x8] sm:$0xff]
        %v2042 = vmul.f32 %v2040, %v2038
        %v2043 = vmul.f32 %v2041, %v2039
        %v2044 = vadd.f32 %v2042, %v2043
        %2045 = vadd.xlane.f32.xlu0 %v2044
        %v2046 = vpop.xlane.xlu0 %2045
        %v2047 = vld [vmem:[%s14] sm:$0x1]
        %v2049 = vperm.slane %v2047, 0
        %v2050 = vlaneseq
        %v2051 = vshrl.u32 %v2050, 7
        %2053 = vset.pattern.permute.xlu0 %v2051
        %2054 = vperm.xlu0 %2053, %v2049
        %v2055 = vpop.permute.xlu0 %2054
        %v2057 = vadd.f32 %v2046, %v2055
        %v2058 = vmul.f32 %v2057, 0.125
        %2060 = vset.pattern.permute.xlu0 0
        %2061 = vperm.xlu0 %2060, %v2058
        %v2062 = vpop.permute.xlu0 %2061
        %v2063 = vlaneseq
        %v2064 = vand.u32 %v2063, 127
        %v2065 = vperm.slane %v2062, %v2064
        %vm2067 = vcmask 57344
        %2068 = vst.msk [vmem:[%s623] sm:$0x1] %vm2067, %v2065
        %s2069 = sand.u32 %s364, 1
        %s2070 = scalar_lea.sflag [#allocation4], %s2069
        %s2071 = sand.u32 %s364, 1
        %s2072 = scalar_lea.vmem [#allocation16], %s2071
        // Predicated region
        $region113: #{tpu_custom_call.1} parent=79 // pred_check
          %p2073 = pneg %p374
        $region114: #{tpu_custom_call.1} parent=79 // pred_check_branch
          %2075 = sbr.rel (%p2073) target = $region116
        $region115: #{tpu_custom_call.1} parent=79 // pred_region
          %2077 = vsyncadd %s2070, 0
          %s2078 = scalar_lea.hbm %s15, %s36
          %s2080 = sshll.u32 %s2072, 4
          %s2081 = int_to_ptr.vmem [resolvable:$true] %s2080
          %s2082 = sshll.u32 %s2078, 4
          %s2083 = int_to_ptr.hbm [resolvable:$true] %s2082
          %2085 = dma.vmem_to_hbm [thread:$0]  %s2081, 16, %s2083, %s2070
        $region116: #{tpu_custom_call.1} parent=79 // pred_fallthru
          _
      $region80: #{tpu_custom_call.1} parent=5 // pred_fallthru
        _
      %p2086 = scmp.le.s32.totalorder 2, %s31
      // Predicated region
      $region117: #{tpu_custom_call.1} parent=5 // pred_check
        %p2087 = pneg %p2086
      $region118: #{tpu_custom_call.1} parent=5 // pred_check_branch
        %2089 = sbr.rel (%p2087) target = $region120
      $region119: #{tpu_custom_call.1} parent=5 // pred_region
        %s2090 = ssub.s32 %s31, 2
        // Predicated region
        $region121: #{tpu_custom_call.1} parent=119 // pred_check
          %p2091 = pneg %p380
        $region122: #{tpu_custom_call.1} parent=119 // pred_check_branch
          %2093 = sbr.rel (%p2091) target = $region124
        $region123: #{tpu_custom_call.1} parent=119 // pred_region
          %s2094 = sand.u32 %s365, 1
          %s2095 = scalar_lea.sflag [#allocation4], %s2094
          %s2096 = sand.u32 %s365, 1
          %s2097 = scalar_lea.vmem [#allocation16], %s2096
          %2099 = dma.done %s2095, 16
        $region124: #{tpu_custom_call.1} parent=119 // pred_fallthru
          _
      $region120: #{tpu_custom_call.1} parent=5 // pred_fallthru
        _
    $region6: #{tpu_custom_call.1} parent=1 // loop_footer
      %s35 = sadd.s32 1, %s31
    $region7: #{tpu_custom_call.1} parent=1 // loop_footer_branch
      %30 = sbr.rel target = $region3
    $region8: #{tpu_custom_call.1} parent=1 // loop_exit
      _
    %2100 = vsyncpa [#allocation3], 1
    %s2101 = scalar_lea.sflag [#allocation3], 1
    %2102 = vsyncpa %s2101, 1
    %2103 = vsyncpa [#allocation6], 1
    %2104 = vsyncpa [#allocation9], 1
    %2105 = vsyncpa [#allocation12], 1
    %2106 = vsyncpa [#allocation15], 1
    %2107 = vsyncpa [#allocation4], 1
    %s2108 = scalar_lea.sflag [#allocation4], 1
    %2109 = vsyncpa %s2108, 1

</llo_original>
